<compile_context>
chip_gen: v5e
topology: v5e:2x2
jax: 0.10.0
libtpu: 0.0.40
codegen_flags: <defaults>
</compile_context>

<pallas_src>
import jax
import jax.numpy as jnp
from jax import lax
from jax.experimental import pallas as pl
from jax.experimental.pallas import tpu as pltpu


# ----------------------------------------------------------------------------
# Kernels
# ----------------------------------------------------------------------------

def _reg_full_kernel(mh_ref, lm_ref, out_ref):
    """grid=(H,). Full (V, D) blocks; W_lm stays resident (constant index_map).

    mh_ref : (1, V, D)  head-h weight
    lm_ref : (V, D)     shared lm_head weight
    out_ref: (1, 8, 128) per-head Frobenius norm, broadcast across the tile
    """
    wh = mh_ref[0]                      # (V, D)
    w = lm_ref[...]                     # (V, D)
    # G_h = W_h^T @ W_lm : contract the vocab (sublane) axis directly,
    # no transpose materialized.
    g = lax.dot_general(wh, w, (((0,), (0,)), ((), ())),
                        preferred_element_type=jnp.float32)
    frob = jnp.sqrt(jnp.sum(g * g))
    out_ref[...] = jnp.full(out_ref.shape, frob, dtype=out_ref.dtype)


def _reg_tiled_kernel(mh_ref, lm_ref, out_ref, acc_ref):
    """grid=(V//tv, H): vocab tiles outer, heads inner.

    Because heads iterate fastest, the W_lm tile's block index only changes
    with k, so it is DMA'd V/tv times total (not once per head).

    mh_ref : (1, tv, D) vocab tile of head-h weight
    lm_ref : (tv, D)    vocab tile of shared lm_head weight
    out_ref: (1, 8, 128) per-head Frobenius norm (written at last k)
    acc_ref: (Hc, D, D) f32 per-head accumulators for G_h = W_h^T @ W_lm
    """
    k = pl.program_id(0)
    h = pl.program_id(1)
    nk = pl.num_programs(0)

    wh = mh_ref[0]                      # (tv, D)
    w = lm_ref[...]                     # (tv, D)
    partial = lax.dot_general(wh, w, (((0,), (0,)), ((), ())),
                              preferred_element_type=jnp.float32)

    @pl.when(k == 0)
    def _():
        acc_ref[h] = partial

    @pl.when(k > 0)
    def _():
        acc_ref[h] = acc_ref[h] + partial

    @pl.when(k == nk - 1)
    def _():
        g = acc_ref[h]
        frob = jnp.sqrt(jnp.sum(g * g))
        out_ref[...] = jnp.full(out_ref.shape, frob, dtype=out_ref.dtype)


# ----------------------------------------------------------------------------
# Wrappers
# ----------------------------------------------------------------------------

_FULL_PATH_BYTES = 4 * 1024 * 1024    # keep W_lm fully resident below this
_ACC_BUDGET_BYTES = 16 * 1024 * 1024  # per-head (D, D) f32 accumulator budget
_TILE_BUDGET_BYTES = 8 * 1024 * 1024  # double-buffered (tv, D) input tiles


def _compiler_params(dimension_semantics, vmem_estimate_bytes):
    kwargs = dict(dimension_semantics=dimension_semantics)
    if vmem_estimate_bytes > 12 * 1024 * 1024:
        kwargs["vmem_limit_bytes"] = int(
            min(1.5 * vmem_estimate_bytes + (1 << 20), 64 * 1024 * 1024))
    return pltpu.CompilerParams(**kwargs)


def _norms_full(mh, lm):
    H, V, D = mh.shape
    isz = jnp.dtype(mh.dtype).itemsize
    est = 2 * V * D * isz + 2 * V * D * isz + 2 * 8 * 128 * 4
    out = pl.pallas_call(
        _reg_full_kernel,
        out_shape=jax.ShapeDtypeStruct((H, 8, 128), jnp.float32),
        grid_spec=pltpu.PrefetchScalarGridSpec(
            num_scalar_prefetch=0,
            grid=(H,),
            in_specs=[
                pl.BlockSpec((1, V, D), lambda h: (h, 0, 0)),
                pl.BlockSpec((V, D), lambda h: (0, 0)),
            ],
            out_specs=pl.BlockSpec((1, 8, 128), lambda h: (h, 0, 0)),
        ),
        compiler_params=_compiler_params(("parallel",), est),
    )(mh, lm)
    return out[:, 0, 0]


def _norms_tiled(mh, lm, tv):
    H, V, D = mh.shape
    assert V % tv == 0
    K = V // tv
    isz = jnp.dtype(mh.dtype).itemsize
    est = 2 * 2 * tv * D * isz + H * D * D * 4 + 2 * 8 * 128 * 4
    out = pl.pallas_call(
        _reg_tiled_kernel,
        out_shape=jax.ShapeDtypeStruct((H, 8, 128), jnp.float32),
        grid_spec=pltpu.PrefetchScalarGridSpec(
            num_scalar_prefetch=0,
            grid=(K, H),
            in_specs=[
                pl.BlockSpec((1, tv, D), lambda k, h: (h, k, 0)),
                pl.BlockSpec((tv, D), lambda k, h: (k, 0)),
            ],
            out_specs=pl.BlockSpec((1, 8, 128), lambda k, h: (h, 0, 0)),
            scratch_shapes=[pltpu.VMEM((H, D, D), jnp.float32)],
        ),
        compiler_params=_compiler_params(("arbitrary", "parallel"), est),
    )(mh, lm)
    return out[:, 0, 0]


def multi_head_reg_norms(multi_lm_head_weights, lm_head_weight, *,
                         tv=None, mode="auto", compute_dtype=None):
    """Returns per-head ||W_h^T @ W_lm||_F as an (H,) f32 vector."""
    H, V, D = multi_lm_head_weights.shape
    assert lm_head_weight.shape == (V, D)

    mh = multi_lm_head_weights
    lm = lm_head_weight
    if compute_dtype is not None:   # optional bf16 cast (halves HBM traffic)
        mh = mh.astype(compute_dtype)
        lm = lm.astype(compute_dtype)
    isz = jnp.dtype(mh.dtype).itemsize

    if mode == "auto":
        mode = "full" if V * D * isz <= _FULL_PATH_BYTES else "tiled"

    if mode == "full":
        return _norms_full(mh, lm)

    # --- tiled path (realistic vocab sizes) ---
    if tv is None:
        tv = V
        for cand in (2048, 1024, 512, 256, 128, 64, 32, 16, 8):
            if V % cand == 0 and 4 * cand * D * isz <= _TILE_BUDGET_BYTES:
                tv = cand
                break
    if V % tv != 0:
        return _norms_full(mh, lm)

    # Chunk heads so the (Hc, D, D) f32 accumulator fits the VMEM budget
    # (matters on v7x with only 64 MiB VMEM and large D).
    hc = max(1, min(H, _ACC_BUDGET_BYTES // (D * D * 4)))
    if hc >= H:
        return _norms_tiled(mh, lm, tv)
    parts = [_norms_tiled(mh[h0:h0 + hc], lm, tv) for h0 in range(0, H, hc)]
    return jnp.concatenate(parts, axis=0)


def sign_language_model_forward(recognition_loss,
                                translation_loss,
                                multi_lm_head_weights,
                                lm_head_weight,
                                *,
                                recognition_weight=1.0,
                                translation_weight=1.0,
                                reg_weight=1.0,
                                debias_lm_head=True,
                                compute_dtype=None):
    """Mirrors the S2T branch of SignLanguageModel_perturbation_multiHead.forward."""
    model_outputs = {
        "recognition_loss": recognition_loss,
        "translation_loss": translation_loss,
    }
    if debias_lm_head:
        total_loss = recognition_loss * recognition_weight
        temp_k = lm_head_weight.shape[0]  # vocab size, as in the torch code
        norms = multi_head_reg_norms(multi_lm_head_weights, lm_head_weight,
                                     compute_dtype=compute_dtype)
        l_reg_loss = jnp.sum(norms) / temp_k
        model_outputs["l_reg_loss"] = l_reg_loss
        total_loss = total_loss + l_reg_loss * reg_weight
    else:
        total_loss = (recognition_loss * recognition_weight
                      + translation_loss * translation_weight)
    model_outputs["total_loss"] = total_loss
    return model_outputs


if __name__ == "__main__":
    key = jax.random.PRNGKey(0)
    H, V, D = 3, 512, 256  # num extra lm heads, vocab size, hidden size

    k1, k2, k3, k4 = jax.random.split(key, 4)
    multi_lm_head_weights = (
        jax.random.normal(k1, (H, V, D), dtype=jnp.float32) * 0.02)
    lm_head_weight = jax.random.normal(k2, (V, D), dtype=jnp.float32) * 0.02
    recognition_loss = jnp.abs(jax.random.normal(k3, (), dtype=jnp.float32))
    translation_loss = jnp.abs(jax.random.normal(k4, (), dtype=jnp.float32))

    # Pure-JAX reference (high-precision matmul)
    ref_norms = jnp.stack([
        jnp.linalg.norm(
            jnp.einsum("vd,ve->de", multi_lm_head_weights[h], lm_head_weight,
                       precision=lax.Precision.HIGHEST))
        for h in range(H)
    ])
    ref_l_reg = jnp.sum(ref_norms) / V
    ref_total = recognition_loss * 1.0 + ref_l_reg * 0.5

    # 1) full-block path (auto-selected at these small shapes)
    outputs = sign_language_model_forward(
        recognition_loss, translation_loss,
        multi_lm_head_weights, lm_head_weight,
        recognition_weight=1.0, translation_weight=1.0,
        reg_weight=0.5, debias_lm_head=True)
    total = jax.block_until_ready(outputs["total_loss"])
    l_reg = jax.block_until_ready(outputs["l_reg_loss"])
    assert jnp.allclose(l_reg, ref_l_reg, rtol=1e-4, atol=1e-5), (l_reg, ref_l_reg)
    assert jnp.allclose(total, ref_total, rtol=1e-4, atol=1e-5), (total, ref_total)

    # 2) tiled / accumulating path (what runs at realistic vocab sizes)
    norms_tiled = jax.block_until_ready(
        multi_head_reg_norms(multi_lm_head_weights, lm_head_weight,
                             mode="tiled", tv=128))
    assert jnp.allclose(norms_tiled, ref_norms, rtol=1e-4, atol=1e-5), (
        norms_tiled, ref_norms)

    # 3) non-debias branch semantics
    outputs2 = sign_language_model_forward(
        recognition_loss, translation_loss,
        multi_lm_head_weights, lm_head_weight, debias_lm_head=False)
    jax.block_until_ready(outputs2["total_loss"])

    print("KERNEL_OK")
</pallas_src>

<mosaic_0001>
module attributes {stable_mosaic.version = 11 : i64} {
  func.func @_reg_full_kernel(%arg0: i32, %arg1: memref<1x512x256xf32, #tpu.memory_space<vmem>>, %arg2: memref<512x256xf32, #tpu.memory_space<vmem>>, %arg3: memref<1x8x128xf32, #tpu.memory_space<vmem>>) attributes {dimension_semantics = [#tpu.dimension_semantics<parallel>], iteration_bounds = array<i64: 3>, scalar_prefetch = 0 : i64, scratch_operands = 0 : i64, tpu.core_type = #tpu.core_type<tc>, window_params = [{transform_indices = @transform_0, window_bounds = array<i64: 1, 512, 256>}, {pipeline_mode = #tpu.pipeline_mode<synchronous>, transform_indices = @transform_1, window_bounds = array<i64: 512, 256>}, {transform_indices = @transform_2, window_bounds = array<i64: 1, 8, 128>}]} {
    %c0 = arith.constant 0 : index
    %c0_0 = arith.constant 0 : index
    %c0_1 = arith.constant 0 : index
    %0 = vector.load %arg1[%c0, %c0_0, %c0_1] : memref<1x512x256xf32, #tpu.memory_space<vmem>>, vector<1x512x256xf32>
    %1 = vector.shape_cast %0 : vector<1x512x256xf32> to vector<512x256xf32>
    %c0_2 = arith.constant 0 : index
    %c0_3 = arith.constant 0 : index
    %2 = vector.load %arg2[%c0_2, %c0_3] : memref<512x256xf32, #tpu.memory_space<vmem>>, vector<512x256xf32>
    %cst = arith.constant dense<0.000000e+00> : vector<256x256xf32>
    %3 = tpu.matmul %1, %2, %cst {dimension_numbers = #tpu.dot_dimension_numbers<[0], [0], [1], [1], [0, 1, 1, 1], [], []>} : vector<512x256xf32>, vector<512x256xf32>, vector<256x256xf32> -> vector<256x256xf32>
    %4 = arith.mulf %3, %3 : vector<256x256xf32>
    %5 = vector.shape_cast %4 : vector<256x256xf32> to vector<1x256x256xf32>
    %cst_4 = arith.constant dense<0.000000e+00> : vector<1xf32>
    %6 = vector.multi_reduction <add>, %5, %cst_4 [1, 2] : vector<1x256x256xf32> to vector<1xf32>
    %7 = vector.shape_cast %6 : vector<1xf32> to vector<1x1x1xf32>
    %8 = vector.extract %7[0, 0, 0] : f32 from vector<1x1x1xf32>
    %9 = math.sqrt %8 : f32
    %10 = vector.broadcast %9 : f32 to vector<1x8x128xf32>
    %c0_5 = arith.constant 0 : index
    %c0_6 = arith.constant 0 : index
    %c0_7 = arith.constant 0 : index
    %11 = vector.load %arg3[%c0_5, %c0_6, %c0_7] : memref<1x8x128xf32, #tpu.memory_space<vmem>>, vector<1x8x128xf32>
    tpu.vector_store %arg3[%c0_5, %c0_6, %c0_7], %10 {strides = array<i32>} : memref<1x8x128xf32, #tpu.memory_space<vmem>>, vector<1x8x128xf32>,
    return
  }
  func.func @transform_0(%arg0: i32) -> (i32, i32, i32) {
    %c0_i32 = arith.constant 0 : i32
    %c0_i32_0 = arith.constant 0 : i32
    %c0_i32_1 = arith.constant 0 : i32
    return %arg0, %c0_i32, %c0_i32_0 : i32, i32, i32
  }
  func.func @transform_1(%arg0: i32) -> (i32, i32) {
    %c0_i32 = arith.constant 0 : i32
    %c0_i32_0 = arith.constant 0 : i32
    %c0_i32_1 = arith.constant 0 : i32
    return %c0_i32, %c0_i32_0 : i32, i32
  }
  func.func @transform_2(%arg0: i32) -> (i32, i32, i32) {
    %c0_i32 = arith.constant 0 : i32
    %c0_i32_0 = arith.constant 0 : i32
    %c0_i32_1 = arith.constant 0 : i32
    return %arg0, %c0_i32, %c0_i32_0 : i32, i32, i32
  }
}

</mosaic_0001>

<llo_original>
// kernel: tpu_custom_call.1
$region0: #{tpu_custom_call.1}
  #allocation0 [shape = 'u32[]', space=smem, size = 0x4, offset = 0x4, fixed_abs, tag = 'smem constant byte address 0x4 - core index']
  #allocation1 [shape = 'u32[72,128]{1,0:T(1,128)}', space=vmem, size = 0x9000, scoped, tag = 'internal scratch']
  %s0 = inlined_call_operand.hbm [shape: f32[3,512,256], index: 0, kind: input, shape index: {}]
  %s1 = inlined_call_operand.hbm [shape: f32[512,256], index: 1, kind: input, shape index: {}]
  %s2 = inlined_call_operand.hbm [shape: f32[3,8,128], index: 2, kind: output, shape index: {}]
  %s3 = sld [smem:[#allocation0]]
  $region49: #{tpu_custom_call.1} parent=0
    _
  %s5 = ssub.s32 1, %s3
  %s6 = scalar_select 0, %s5, %s3
  $region1: #{tpu_custom_call.1} parent=0
    #allocation2 [shape = 'u8[1048576]{0}', space=vmem, size = 0x100000, scoped, tag = 'input window, operand 0']
    #allocation3 [shape = 's32[2]{0}', space=sflag, size = 0x8, scoped, tag = 'scoped memory for tpu_custom_call.1']
    #allocation4 [shape = 's32[2]{0}', space=sflag, size = 0x8, scoped, tag = 'scoped memory for tpu_custom_call.1']
    #allocation5 [shape = 'u8[524288]{0}', space=vmem, size = 0x80000, scoped, tag = 'input window, operand 1, single buffered']
    #allocation6 [shape = 's32[1]{0}', space=sflag, size = 0x4, scoped, tag = 'scoped memory for tpu_custom_call.1']
    #allocation7 [shape = 'u8[8192]{0}', space=vmem, size = 0x2000, scoped, tag = 'output window, operand 0']
    %7 = vsyncpa [#allocation3], 0
    %s8 = scalar_lea.sflag [#allocation3], 1
    %9 = vsyncpa %s8, 0
    %10 = vsyncpa [#allocation6], 0
    %11 = vsyncpa [#allocation4], 0
    %s12 = scalar_lea.sflag [#allocation4], 1
    %13 = vsyncpa %s12, 0
    loop: start=0, step=1, limit=5
    $region2: #{tpu_custom_call.1} parent=1 // loop_pre_header
      _
    $region3: #{tpu_custom_call.1} parent=1 // loop_header
      %s15 = sphi 0, %s19
      %p16 = scmp.ge.s32.totalorder %s15, 5
      %s25 = sphi 0, %s27
      %s28 = sphi 0, %s25
      %s29 = sphi 0, %s28
      %s45 = sphi 0, %s29
      %s49 = sphi 0, %s49
      %s51 = sphi 0, %s49
      %s52 = sphi 0, %s51
      %s66 = sphi 0, %s52
      %s72 = sphi 0, %s74
      %s75 = sphi 0, %s72
      %s76 = sphi 0, %s75
      %s92 = sphi 0, %s76
    $region4: #{tpu_custom_call.1} parent=1 // loop_header_branch
      %18 = sbr.rel (%p16) target = $region8
    $region5: #{tpu_custom_call.1} parent=1 // loop_body
      %s20 = ssub.s32 %s15, 1
      %s21 = ssub.s32 %s15, 2
      %s22 = sadd.s32 %s15, 1
      %s23 = ssub.s32 %s15, %s22
      %p24 = scmp.eq.s32.totalorder %s23, 0
      %s26 = sadd.s32 %s25, 1
      %s27 = scalar_select %p24, %s25, %s26
      %p30 = pneg %p24
      %p31 = scmp.eq.s32.totalorder %s15, 2
      %p32 = por %p30, %p31
      %p33 = scmp.ne.s32.totalorder %s25, %s28
      %p34 = scmp.eq.s32.totalorder %s15, 0
      %p35 = por %p33, %p34
      %p36 = scmp.ne.s32.totalorder %s25, %s28
      %p37 = scmp.eq.s32.totalorder %s20, 2
      %p38 = por %p36, %p37
      %p39 = scmp.ne.s32.totalorder %s28, %s29
      %p40 = scmp.eq.s32.totalorder %s20, 0
      %p41 = por %p39, %p40
      %p42 = scmp.ne.s32.totalorder %s28, %s29
      %p43 = scmp.eq.s32.totalorder %s21, 2
      %p44 = por %p42, %p43
      %p46 = scmp.ne.s32.totalorder %s29, %s45
      %p47 = scmp.eq.s32.totalorder %s21, 0
      %p48 = por %p46, %p47
      %s50 = sadd.s32 %s49, 1
      %p53 = scmp.eq.s32.totalorder %s15, 2
      %p54 = scmp.ne.s32.totalorder %s49, %s51
      %p55 = scmp.eq.s32.totalorder %s15, 0
      %p56 = por %p54, %p55
      %p57 = scmp.ne.s32.totalorder %s49, %s51
      %p58 = scmp.eq.s32.totalorder %s20, 2
      %p59 = por %p57, %p58
      %p60 = scmp.ne.s32.totalorder %s51, %s52
      %p61 = scmp.eq.s32.totalorder %s20, 0
      %p62 = por %p60, %p61
      %p63 = scmp.ne.s32.totalorder %s51, %s52
      %p64 = scmp.eq.s32.totalorder %s21, 2
      %p65 = por %p63, %p64
      %p67 = scmp.ne.s32.totalorder %s52, %s66
      %p68 = scmp.eq.s32.totalorder %s21, 0
      %p69 = por %p67, %p68
      %s70 = ssub.s32 %s15, %s22
      %p71 = scmp.eq.s32.totalorder %s70, 0
      %s73 = sadd.s32 %s72, 1
      %s74 = scalar_select %p71, %s72, %s73
      %p77 = pneg %p71
      %p78 = scmp.eq.s32.totalorder %s15, 2
      %p79 = por %p77, %p78
      %p80 = scmp.ne.s32.totalorder %s72, %s75
      %p81 = scmp.eq.s32.totalorder %s15, 0
      %p82 = por %p80, %p81
      %p83 = scmp.ne.s32.totalorder %s72, %s75
      %p84 = scmp.eq.s32.totalorder %s20, 2
      %p85 = por %p83, %p84
      %p86 = scmp.ne.s32.totalorder %s75, %s76
      %p87 = scmp.eq.s32.totalorder %s20, 0
      %p88 = por %p86, %p87
      %p89 = scmp.ne.s32.totalorder %s75, %s76
      %p90 = scmp.eq.s32.totalorder %s21, 2
      %p91 = por %p89, %p90
      %p93 = scmp.ne.s32.totalorder %s76, %s92
      %p94 = scmp.eq.s32.totalorder %s21, 0
      %p95 = por %p93, %p94
      %p96 = scmp.le.s32.totalorder 1, %s15
      %p97 = scmp.lt.s32.totalorder %s15, 4
      %p98 = pnand %p96, %p97
      %p99 = pneg %p98
      // Predicated region
      $region9: #{tpu_custom_call.1} parent=5 // pred_check
        _
      $region10: #{tpu_custom_call.1} parent=5 // pred_check_branch
        %101 = sbr.rel (%p98) target = $region12
      $region11: #{tpu_custom_call.1} parent=5 // pred_region
        %s102 = ssub.s32 %s15, 1
        // Predicated region
        $region13: #{tpu_custom_call.1} parent=11 // pred_check
          %p103 = pneg %p62
        $region14: #{tpu_custom_call.1} parent=11 // pred_check_branch
          %105 = sbr.rel (%p103) target = $region16
        $region15: #{tpu_custom_call.1} parent=11 // pred_region
          %107 = vsyncadd [#allocation6], 0
          %s108 = sshll.u32 %s1, 4
          %s109 = int_to_ptr.hbm [resolvable:$true] %s108
          %s110 = sshll.u32 [#allocation5], 4
          %s111 = int_to_ptr.vmem [resolvable:$true] %s110
          %116 = dma.hbm_to_vmem [thread:$0]  %s109, 16384, %s111, [#allocation6], 256, 256, 16
        $region16: #{tpu_custom_call.1} parent=11 // pred_fallthru
          _
      $region12: #{tpu_custom_call.1} parent=5 // pred_fallthru
        _
      %p117 = scmp.lt.s32.totalorder %s15, 3
      // Predicated region
      $region17: #{tpu_custom_call.1} parent=5 // pred_check
        %p118 = pneg %p117
      $region18: #{tpu_custom_call.1} parent=5 // pred_check_branch
        %120 = sbr.rel (%p118) target = $region20
      $region19: #{tpu_custom_call.1} parent=5 // pred_region
        // Predicated region
        $region21: #{tpu_custom_call.1} parent=19 // pred_check
          %p121 = pneg %p35
        $region22: #{tpu_custom_call.1} parent=19 // pred_check_branch
          %123 = sbr.rel (%p121) target = $region24
        $region23: #{tpu_custom_call.1} parent=19 // pred_region
          %s124 = sand.u32 %s25, 1
          %s125 = scalar_lea.sflag [#allocation3], %s124
          %s126 = sand.u32 %s25, 1
          %s127 = smul.addr %s126, 1024
          %s128 = scalar_lea.vmem [#allocation2], %s127
          %130 = vsyncadd %s125, 0
          %s131 = smul.addr %s15, 128
          %s132 = smul.addr %s131, 8
          %s133 = scalar_lea.hbm %s0, %s132
          %s134 = sshll.u32 %s133, 4
          %s135 = int_to_ptr.hbm [resolvable:$true] %s134
          %s136 = sshll.u32 %s128, 4
          %s137 = int_to_ptr.vmem [resolvable:$true] %s136
          %142 = dma.hbm_to_vmem [thread:$0]  %s135, 16384, %s137, %s125, 256, 256, 16
        $region24: #{tpu_custom_call.1} parent=19 // pred_fallthru
          _
      $region20: #{tpu_custom_call.1} parent=5 // pred_fallthru
        _
      %p143 = scmp.le.s32.totalorder 1, %s15
      %p144 = scmp.lt.s32.totalorder %s15, 4
      %p145 = pnand %p143, %p144
      %p146 = pneg %p145
      // Predicated region
      $region25: #{tpu_custom_call.1} parent=5 // pred_check
        _
      $region26: #{tpu_custom_call.1} parent=5 // pred_check_branch
        %148 = sbr.rel (%p145) target = $region28
      $region27: #{tpu_custom_call.1} parent=5 // pred_region
        %s149 = ssub.s32 %s15, 1
        %s150 = sand.u32 %s28, 1
        %s151 = scalar_lea.sflag [#allocation3], %s150
        %s152 = sand.u32 %s28, 1
        %s153 = smul.addr %s152, 1024
        %s154 = scalar_lea.vmem [#allocation2], %s153
        // Predicated region
        $region29: #{tpu_custom_call.1} parent=27 // pred_check
          %p155 = pneg %p41
        $region30: #{tpu_custom_call.1} parent=27 // pred_check_branch
          %157 = sbr.rel (%p155) target = $region32
        $region31: #{tpu_custom_call.1} parent=27 // pred_region
          %159 = dma.done %s151, 16384
        $region32: #{tpu_custom_call.1} parent=27 // pred_fallthru
          _
        // Predicated region
        $region33: #{tpu_custom_call.1} parent=27 // pred_check
          %p160 = pneg %p62
        $region34: #{tpu_custom_call.1} parent=27 // pred_check_branch
          %162 = sbr.rel (%p160) target = $region36
        $region35: #{tpu_custom_call.1} parent=27 // pred_region
          %164 = dma.done [#allocation6], 16384
        $region36: #{tpu_custom_call.1} parent=27 // pred_fallthru
          _
        %s165 = sand.u32 %s28, 1
        %s166 = scalar_lea.sflag [#allocation3], %s165
        %s167 = sand.u32 %s28, 1
        %s168 = smul.addr %s167, 1024
        %s169 = scalar_lea.vmem [#allocation2], %s168
        %p170 = pneg %p41
        %p171 = pneg %p38
        %p172 = pneg %p62
        %p173 = pneg %p59
        %p174 = pneg %p88
        %p175 = pneg %p85
        %s176 = sand.u32 %s75, 1
        %s177 = scalar_lea.sflag [#allocation4], %s176
        %s178 = sand.u32 %s75, 1
        %s179 = smul.addr %s178, 8
        %s180 = scalar_lea.vmem [#allocation7], %s179
        %v181 = vld [vmem:[%s154] sm:$0xff]
        %v182 = vld [vmem:[%s154 + $0x8] sm:$0xff]
        %v183 = vld [vmem:[%s154 + $0x10] sm:$0xff]
        %v184 = vld [vmem:[%s154 + $0x18] sm:$0xff]
        %v185 = vld [vmem:[%s154 + $0x20] sm:$0xff]
        %v186 = vld [vmem:[%s154 + $0x28] sm:$0xff]
        %v187 = vld [vmem:[%s154 + $0x30] sm:$0xff]
        %v188 = vld [vmem:[%s154 + $0x38] sm:$0xff]
        %v189 = vld [vmem:[%s154 + $0x40] sm:$0xff]
        %v190 = vld [vmem:[%s154 + $0x48] sm:$0xff]
        %v191 = vld [vmem:[%s154 + $0x50] sm:$0xff]
        %v192 = vld [vmem:[%s154 + $0x58] sm:$0xff]
        %v193 = vld [vmem:[%s154 + $0x60] sm:$0xff]
        %v194 = vld [vmem:[%s154 + $0x68] sm:$0xff]
        %v195 = vld [vmem:[%s154 + $0x70] sm:$0xff]
        %v196 = vld [vmem:[%s154 + $0x78] sm:$0xff]
        %v197 = vld [vmem:[%s154 + $0x80] sm:$0xff]
        %v198 = vld [vmem:[%s154 + $0x88] sm:$0xff]
        %v199 = vld [vmem:[%s154 + $0x90] sm:$0xff]
        %v200 = vld [vmem:[%s154 + $0x98] sm:$0xff]
        %v201 = vld [vmem:[%s154 + $0xa0] sm:$0xff]
        %v202 = vld [vmem:[%s154 + $0xa8] sm:$0xff]
        %v203 = vld [vmem:[%s154 + $0xb0] sm:$0xff]
        %v204 = vld [vmem:[%s154 + $0xb8] sm:$0xff]
        %v205 = vld [vmem:[%s154 + $0xc0] sm:$0xff]
        %v206 = vld [vmem:[%s154 + $0xc8] sm:$0xff]
        %v207 = vld [vmem:[%s154 + $0xd0] sm:$0xff]
        %v208 = vld [vmem:[%s154 + $0xd8] sm:$0xff]
        %v209 = vld [vmem:[%s154 + $0xe0] sm:$0xff]
        %v210 = vld [vmem:[%s154 + $0xe8] sm:$0xff]
        %v211 = vld [vmem:[%s154 + $0xf0] sm:$0xff]
        %v212 = vld [vmem:[%s154 + $0xf8] sm:$0xff]
        %v213 = vld [vmem:[%s154 + $0x100] sm:$0xff]
        %v214 = vld [vmem:[%s154 + $0x108] sm:$0xff]
        %v215 = vld [vmem:[%s154 + $0x110] sm:$0xff]
        %v216 = vld [vmem:[%s154 + $0x118] sm:$0xff]
        %v217 = vld [vmem:[%s154 + $0x120] sm:$0xff]
        %v218 = vld [vmem:[%s154 + $0x128] sm:$0xff]
        %v219 = vld [vmem:[%s154 + $0x130] sm:$0xff]
        %v220 = vld [vmem:[%s154 + $0x138] sm:$0xff]
        %v221 = vld [vmem:[%s154 + $0x140] sm:$0xff]
        %v222 = vld [vmem:[%s154 + $0x148] sm:$0xff]
        %v223 = vld [vmem:[%s154 + $0x150] sm:$0xff]
        %v224 = vld [vmem:[%s154 + $0x158] sm:$0xff]
        %v225 = vld [vmem:[%s154 + $0x160] sm:$0xff]
        %v226 = vld [vmem:[%s154 + $0x168] sm:$0xff]
        %v227 = vld [vmem:[%s154 + $0x170] sm:$0xff]
        %v228 = vld [vmem:[%s154 + $0x178] sm:$0xff]
        %v229 = vld [vmem:[%s154 + $0x180] sm:$0xff]
        %v230 = vld [vmem:[%s154 + $0x188] sm:$0xff]
        %v231 = vld [vmem:[%s154 + $0x190] sm:$0xff]
        %v232 = vld [vmem:[%s154 + $0x198] sm:$0xff]
        %v233 = vld [vmem:[%s154 + $0x1a0] sm:$0xff]
        %v234 = vld [vmem:[%s154 + $0x1a8] sm:$0xff]
        %v235 = vld [vmem:[%s154 + $0x1b0] sm:$0xff]
        %v236 = vld [vmem:[%s154 + $0x1b8] sm:$0xff]
        %v237 = vld [vmem:[%s154 + $0x1c0] sm:$0xff]
        %v238 = vld [vmem:[%s154 + $0x1c8] sm:$0xff]
        %v239 = vld [vmem:[%s154 + $0x1d0] sm:$0xff]
        %v240 = vld [vmem:[%s154 + $0x1d8] sm:$0xff]
        %v241 = vld [vmem:[%s154 + $0x1e0] sm:$0xff]
        %v242 = vld [vmem:[%s154 + $0x1e8] sm:$0xff]
        %v243 = vld [vmem:[%s154 + $0x1f0] sm:$0xff]
        %v244 = vld [vmem:[%s154 + $0x1f8] sm:$0xff]
        %v245 = vld [vmem:[%s154 + $0x200] sm:$0xff]
        %v246 = vld [vmem:[%s154 + $0x208] sm:$0xff]
        %v247 = vld [vmem:[%s154 + $0x210] sm:$0xff]
        %v248 = vld [vmem:[%s154 + $0x218] sm:$0xff]
        %v249 = vld [vmem:[%s154 + $0x220] sm:$0xff]
        %v250 = vld [vmem:[%s154 + $0x228] sm:$0xff]
        %v251 = vld [vmem:[%s154 + $0x230] sm:$0xff]
        %v252 = vld [vmem:[%s154 + $0x238] sm:$0xff]
        %v253 = vld [vmem:[%s154 + $0x240] sm:$0xff]
        %v254 = vld [vmem:[%s154 + $0x248] sm:$0xff]
        %v255 = vld [vmem:[%s154 + $0x250] sm:$0xff]
        %v256 = vld [vmem:[%s154 + $0x258] sm:$0xff]
        %v257 = vld [vmem:[%s154 + $0x260] sm:$0xff]
        %v258 = vld [vmem:[%s154 + $0x268] sm:$0xff]
        %v259 = vld [vmem:[%s154 + $0x270] sm:$0xff]
        %v260 = vld [vmem:[%s154 + $0x278] sm:$0xff]
        %v261 = vld [vmem:[%s154 + $0x280] sm:$0xff]
        %v262 = vld [vmem:[%s154 + $0x288] sm:$0xff]
        %v263 = vld [vmem:[%s154 + $0x290] sm:$0xff]
        %v264 = vld [vmem:[%s154 + $0x298] sm:$0xff]
        %v265 = vld [vmem:[%s154 + $0x2a0] sm:$0xff]
        %v266 = vld [vmem:[%s154 + $0x2a8] sm:$0xff]
        %v267 = vld [vmem:[%s154 + $0x2b0] sm:$0xff]
        %v268 = vld [vmem:[%s154 + $0x2b8] sm:$0xff]
        %v269 = vld [vmem:[%s154 + $0x2c0] sm:$0xff]
        %v270 = vld [vmem:[%s154 + $0x2c8] sm:$0xff]
        %v271 = vld [vmem:[%s154 + $0x2d0] sm:$0xff]
        %v272 = vld [vmem:[%s154 + $0x2d8] sm:$0xff]
        %v273 = vld [vmem:[%s154 + $0x2e0] sm:$0xff]
        %v274 = vld [vmem:[%s154 + $0x2e8] sm:$0xff]
        %v275 = vld [vmem:[%s154 + $0x2f0] sm:$0xff]
        %v276 = vld [vmem:[%s154 + $0x2f8] sm:$0xff]
        %v277 = vld [vmem:[%s154 + $0x300] sm:$0xff]
        %v278 = vld [vmem:[%s154 + $0x308] sm:$0xff]
        %v279 = vld [vmem:[%s154 + $0x310] sm:$0xff]
        %v280 = vld [vmem:[%s154 + $0x318] sm:$0xff]
        %v281 = vld [vmem:[%s154 + $0x320] sm:$0xff]
        %v282 = vld [vmem:[%s154 + $0x328] sm:$0xff]
        %v283 = vld [vmem:[%s154 + $0x330] sm:$0xff]
        %v284 = vld [vmem:[%s154 + $0x338] sm:$0xff]
        %v285 = vld [vmem:[%s154 + $0x340] sm:$0xff]
        %v286 = vld [vmem:[%s154 + $0x348] sm:$0xff]
        %v287 = vld [vmem:[%s154 + $0x350] sm:$0xff]
        %v288 = vld [vmem:[%s154 + $0x358] sm:$0xff]
        %v289 = vld [vmem:[%s154 + $0x360] sm:$0xff]
        %v290 = vld [vmem:[%s154 + $0x368] sm:$0xff]
        %v291 = vld [vmem:[%s154 + $0x370] sm:$0xff]
        %v292 = vld [vmem:[%s154 + $0x378] sm:$0xff]
        %v293 = vld [vmem:[%s154 + $0x380] sm:$0xff]
        %v294 = vld [vmem:[%s154 + $0x388] sm:$0xff]
        %v295 = vld [vmem:[%s154 + $0x390] sm:$0xff]
        %v296 = vld [vmem:[%s154 + $0x398] sm:$0xff]
        %v297 = vld [vmem:[%s154 + $0x3a0] sm:$0xff]
        %v298 = vld [vmem:[%s154 + $0x3a8] sm:$0xff]
        %v299 = vld [vmem:[%s154 + $0x3b0] sm:$0xff]
        %v300 = vld [vmem:[%s154 + $0x3b8] sm:$0xff]
        %v301 = vld [vmem:[%s154 + $0x3c0] sm:$0xff]
        %v302 = vld [vmem:[%s154 + $0x3c8] sm:$0xff]
        %v303 = vld [vmem:[%s154 + $0x3d0] sm:$0xff]
        %v304 = vld [vmem:[%s154 + $0x3d8] sm:$0xff]
        %v305 = vld [vmem:[%s154 + $0x3e0] sm:$0xff]
        %v306 = vld [vmem:[%s154 + $0x3e8] sm:$0xff]
        %v307 = vld [vmem:[%s154 + $0x3f0] sm:$0xff]
        %v308 = vld [vmem:[%s154 + $0x3f8] sm:$0xff]
        %v309 = vld [vmem:[#allocation5] sm:$0xff]
        %v310 = vld [vmem:[#allocation5 + $0x8] sm:$0xff]
        %v311 = vld [vmem:[#allocation5 + $0x10] sm:$0xff]
        %v312 = vld [vmem:[#allocation5 + $0x18] sm:$0xff]
        %v313 = vld [vmem:[#allocation5 + $0x20] sm:$0xff]
        %v314 = vld [vmem:[#allocation5 + $0x28] sm:$0xff]
        %v315 = vld [vmem:[#allocation5 + $0x30] sm:$0xff]
        %v316 = vld [vmem:[#allocation5 + $0x38] sm:$0xff]
        %v317 = vld [vmem:[#allocation5 + $0x40] sm:$0xff]
        %v318 = vld [vmem:[#allocation5 + $0x48] sm:$0xff]
        %v319 = vld [vmem:[#allocation5 + $0x50] sm:$0xff]
        %v320 = vld [vmem:[#allocation5 + $0x58] sm:$0xff]
        %v321 = vld [vmem:[#allocation5 + $0x60] sm:$0xff]
        %v322 = vld [vmem:[#allocation5 + $0x68] sm:$0xff]
        %v323 = vld [vmem:[#allocation5 + $0x70] sm:$0xff]
        %v324 = vld [vmem:[#allocation5 + $0x78] sm:$0xff]
        %v325 = vld [vmem:[#allocation5 + $0x80] sm:$0xff]
        %v326 = vld [vmem:[#allocation5 + $0x88] sm:$0xff]
        %v327 = vld [vmem:[#allocation5 + $0x90] sm:$0xff]
        %v328 = vld [vmem:[#allocation5 + $0x98] sm:$0xff]
        %v329 = vld [vmem:[#allocation5 + $0xa0] sm:$0xff]
        %v330 = vld [vmem:[#allocation5 + $0xa8] sm:$0xff]
        %v331 = vld [vmem:[#allocation5 + $0xb0] sm:$0xff]
        %v332 = vld [vmem:[#allocation5 + $0xb8] sm:$0xff]
        %v333 = vld [vmem:[#allocation5 + $0xc0] sm:$0xff]
        %v334 = vld [vmem:[#allocation5 + $0xc8] sm:$0xff]
        %v335 = vld [vmem:[#allocation5 + $0xd0] sm:$0xff]
        %v336 = vld [vmem:[#allocation5 + $0xd8] sm:$0xff]
        %v337 = vld [vmem:[#allocation5 + $0xe0] sm:$0xff]
        %v338 = vld [vmem:[#allocation5 + $0xe8] sm:$0xff]
        %v339 = vld [vmem:[#allocation5 + $0xf0] sm:$0xff]
        %v340 = vld [vmem:[#allocation5 + $0xf8] sm:$0xff]
        %v341 = vld [vmem:[#allocation5 + $0x100] sm:$0xff]
        %v342 = vld [vmem:[#allocation5 + $0x108] sm:$0xff]
        %v343 = vld [vmem:[#allocation5 + $0x110] sm:$0xff]
        %v344 = vld [vmem:[#allocation5 + $0x118] sm:$0xff]
        %v345 = vld [vmem:[#allocation5 + $0x120] sm:$0xff]
        %v346 = vld [vmem:[#allocation5 + $0x128] sm:$0xff]
        %v347 = vld [vmem:[#allocation5 + $0x130] sm:$0xff]
        %v348 = vld [vmem:[#allocation5 + $0x138] sm:$0xff]
        %v349 = vld [vmem:[#allocation5 + $0x140] sm:$0xff]
        %v350 = vld [vmem:[#allocation5 + $0x148] sm:$0xff]
        %v351 = vld [vmem:[#allocation5 + $0x150] sm:$0xff]
        %v352 = vld [vmem:[#allocation5 + $0x158] sm:$0xff]
        %v353 = vld [vmem:[#allocation5 + $0x160] sm:$0xff]
        %v354 = vld [vmem:[#allocation5 + $0x168] sm:$0xff]
        %v355 = vld [vmem:[#allocation5 + $0x170] sm:$0xff]
        %v356 = vld [vmem:[#allocation5 + $0x178] sm:$0xff]
        %v357 = vld [vmem:[#allocation5 + $0x180] sm:$0xff]
        %v358 = vld [vmem:[#allocation5 + $0x188] sm:$0xff]
        %v359 = vld [vmem:[#allocation5 + $0x190] sm:$0xff]
        %v360 = vld [vmem:[#allocation5 + $0x198] sm:$0xff]
        %v361 = vld [vmem:[#allocation5 + $0x1a0] sm:$0xff]
        %v362 = vld [vmem:[#allocation5 + $0x1a8] sm:$0xff]
        %v363 = vld [vmem:[#allocation5 + $0x1b0] sm:$0xff]
        %v364 = vld [vmem:[#allocation5 + $0x1b8] sm:$0xff]
        %v365 = vld [vmem:[#allocation5 + $0x1c0] sm:$0xff]
        %v366 = vld [vmem:[#allocation5 + $0x1c8] sm:$0xff]
        %v367 = vld [vmem:[#allocation5 + $0x1d0] sm:$0xff]
        %v368 = vld [vmem:[#allocation5 + $0x1d8] sm:$0xff]
        %v369 = vld [vmem:[#allocation5 + $0x1e0] sm:$0xff]
        %v370 = vld [vmem:[#allocation5 + $0x1e8] sm:$0xff]
        %v371 = vld [vmem:[#allocation5 + $0x1f0] sm:$0xff]
        %v372 = vld [vmem:[#allocation5 + $0x1f8] sm:$0xff]
        %v373 = vld [vmem:[#allocation5 + $0x200] sm:$0xff]
        %v374 = vld [vmem:[#allocation5 + $0x208] sm:$0xff]
        %v375 = vld [vmem:[#allocation5 + $0x210] sm:$0xff]
        %v376 = vld [vmem:[#allocation5 + $0x218] sm:$0xff]
        %v377 = vld [vmem:[#allocation5 + $0x220] sm:$0xff]
        %v378 = vld [vmem:[#allocation5 + $0x228] sm:$0xff]
        %v379 = vld [vmem:[#allocation5 + $0x230] sm:$0xff]
        %v380 = vld [vmem:[#allocation5 + $0x238] sm:$0xff]
        %v381 = vld [vmem:[#allocation5 + $0x240] sm:$0xff]
        %v382 = vld [vmem:[#allocation5 + $0x248] sm:$0xff]
        %v383 = vld [vmem:[#allocation5 + $0x250] sm:$0xff]
        %v384 = vld [vmem:[#allocation5 + $0x258] sm:$0xff]
        %v385 = vld [vmem:[#allocation5 + $0x260] sm:$0xff]
        %v386 = vld [vmem:[#allocation5 + $0x268] sm:$0xff]
        %v387 = vld [vmem:[#allocation5 + $0x270] sm:$0xff]
        %v388 = vld [vmem:[#allocation5 + $0x278] sm:$0xff]
        %v389 = vld [vmem:[#allocation5 + $0x280] sm:$0xff]
        %v390 = vld [vmem:[#allocation5 + $0x288] sm:$0xff]
        %v391 = vld [vmem:[#allocation5 + $0x290] sm:$0xff]
        %v392 = vld [vmem:[#allocation5 + $0x298] sm:$0xff]
        %v393 = vld [vmem:[#allocation5 + $0x2a0] sm:$0xff]
        %v394 = vld [vmem:[#allocation5 + $0x2a8] sm:$0xff]
        %v395 = vld [vmem:[#allocation5 + $0x2b0] sm:$0xff]
        %v396 = vld [vmem:[#allocation5 + $0x2b8] sm:$0xff]
        %v397 = vld [vmem:[#allocation5 + $0x2c0] sm:$0xff]
        %v398 = vld [vmem:[#allocation5 + $0x2c8] sm:$0xff]
        %v399 = vld [vmem:[#allocation5 + $0x2d0] sm:$0xff]
        %v400 = vld [vmem:[#allocation5 + $0x2d8] sm:$0xff]
        %v401 = vld [vmem:[#allocation5 + $0x2e0] sm:$0xff]
        %v402 = vld [vmem:[#allocation5 + $0x2e8] sm:$0xff]
        %v403 = vld [vmem:[#allocation5 + $0x2f0] sm:$0xff]
        %v404 = vld [vmem:[#allocation5 + $0x2f8] sm:$0xff]
        %v405 = vld [vmem:[#allocation5 + $0x300] sm:$0xff]
        %v406 = vld [vmem:[#allocation5 + $0x308] sm:$0xff]
        %v407 = vld [vmem:[#allocation5 + $0x310] sm:$0xff]
        %v408 = vld [vmem:[#allocation5 + $0x318] sm:$0xff]
        %v409 = vld [vmem:[#allocation5 + $0x320] sm:$0xff]
        %v410 = vld [vmem:[#allocation5 + $0x328] sm:$0xff]
        %v411 = vld [vmem:[#allocation5 + $0x330] sm:$0xff]
        %v412 = vld [vmem:[#allocation5 + $0x338] sm:$0xff]
        %v413 = vld [vmem:[#allocation5 + $0x340] sm:$0xff]
        %v414 = vld [vmem:[#allocation5 + $0x348] sm:$0xff]
        %v415 = vld [vmem:[#allocation5 + $0x350] sm:$0xff]
        %v416 = vld [vmem:[#allocation5 + $0x358] sm:$0xff]
        %v417 = vld [vmem:[#allocation5 + $0x360] sm:$0xff]
        %v418 = vld [vmem:[#allocation5 + $0x368] sm:$0xff]
        %v419 = vld [vmem:[#allocation5 + $0x370] sm:$0xff]
        %v420 = vld [vmem:[#allocation5 + $0x378] sm:$0xff]
        %v421 = vld [vmem:[#allocation5 + $0x380] sm:$0xff]
        %v422 = vld [vmem:[#allocation5 + $0x388] sm:$0xff]
        %v423 = vld [vmem:[#allocation5 + $0x390] sm:$0xff]
        %v424 = vld [vmem:[#allocation5 + $0x398] sm:$0xff]
        %v425 = vld [vmem:[#allocation5 + $0x3a0] sm:$0xff]
        %v426 = vld [vmem:[#allocation5 + $0x3a8] sm:$0xff]
        %v427 = vld [vmem:[#allocation5 + $0x3b0] sm:$0xff]
        %v428 = vld [vmem:[#allocation5 + $0x3b8] sm:$0xff]
        %v429 = vld [vmem:[#allocation5 + $0x3c0] sm:$0xff]
        %v430 = vld [vmem:[#allocation5 + $0x3c8] sm:$0xff]
        %v431 = vld [vmem:[#allocation5 + $0x3d0] sm:$0xff]
        %v432 = vld [vmem:[#allocation5 + $0x3d8] sm:$0xff]
        %v433 = vld [vmem:[#allocation5 + $0x3e0] sm:$0xff]
        %v434 = vld [vmem:[#allocation5 + $0x3e8] sm:$0xff]
        %v435 = vld [vmem:[#allocation5 + $0x3f0] sm:$0xff]
        %v436 = vld [vmem:[#allocation5 + $0x3f8] sm:$0xff]
        %437 = vxpose.xlu0.b32.start [1/16] %v181, 128
        %438 = vxpose.xlu0.b32.cont [2/16] %v183, 128
        %439 = vxpose.xlu0.b32.cont [3/16] %v185, 128
        %440 = vxpose.xlu0.b32.cont [4/16] %v187, 128
        %441 = vxpose.xlu0.b32.cont [5/16] %v189, 128
        %442 = vxpose.xlu0.b32.cont [6/16] %v191, 128
        %443 = vxpose.xlu0.b32.cont [7/16] %v193, 128
        %444 = vxpose.xlu0.b32.cont [8/16] %v195, 128
        %445 = vxpose.xlu0.b32.cont [9/16] %v197, 128
        %446 = vxpose.xlu0.b32.cont [10/16] %v199, 128
        %447 = vxpose.xlu0.b32.cont [11/16] %v201, 128
        %448 = vxpose.xlu0.b32.cont [12/16] %v203, 128
        %449 = vxpose.xlu0.b32.cont [13/16] %v205, 128
        %450 = vxpose.xlu0.b32.cont [14/16] %v207, 128
        %451 = vxpose.xlu0.b32.cont [15/16] %v209, 128
        %452 = vxpose.xlu0.b32.end [16/16] %v211, 128
        %v453 = vpop.trf.xlu0
        %v454 = vpop.trf.xlu0
        %v455 = vpop.trf.xlu0
        %v456 = vpop.trf.xlu0
        %v457 = vpop.trf.xlu0
        %v458 = vpop.trf.xlu0
        %v459 = vpop.trf.xlu0
        %v460 = vpop.trf.xlu0
        %v461 = vpop.trf.xlu0
        %v462 = vpop.trf.xlu0
        %v463 = vpop.trf.xlu0
        %v464 = vpop.trf.xlu0
        %v465 = vpop.trf.xlu0
        %v466 = vpop.trf.xlu0
        %v467 = vpop.trf.xlu0
        %v468 = vpop.trf.xlu0
        %469 = vxpose.xlu0.b32.start [1/16] %v182, 128
        %470 = vxpose.xlu0.b32.cont [2/16] %v184, 128
        %471 = vxpose.xlu0.b32.cont [3/16] %v186, 128
        %472 = vxpose.xlu0.b32.cont [4/16] %v188, 128
        %473 = vxpose.xlu0.b32.cont [5/16] %v190, 128
        %474 = vxpose.xlu0.b32.cont [6/16] %v192, 128
        %475 = vxpose.xlu0.b32.cont [7/16] %v194, 128
        %476 = vxpose.xlu0.b32.cont [8/16] %v196, 128
        %477 = vxpose.xlu0.b32.cont [9/16] %v198, 128
        %478 = vxpose.xlu0.b32.cont [10/16] %v200, 128
        %479 = vxpose.xlu0.b32.cont [11/16] %v202, 128
        %480 = vxpose.xlu0.b32.cont [12/16] %v204, 128
        %481 = vxpose.xlu0.b32.cont [13/16] %v206, 128
        %482 = vxpose.xlu0.b32.cont [14/16] %v208, 128
        %483 = vxpose.xlu0.b32.cont [15/16] %v210, 128
        %484 = vxpose.xlu0.b32.end [16/16] %v212, 128
        %v485 = vpop.trf.xlu0
        %v486 = vpop.trf.xlu0
        %v487 = vpop.trf.xlu0
        %v488 = vpop.trf.xlu0
        %v489 = vpop.trf.xlu0
        %v490 = vpop.trf.xlu0
        %v491 = vpop.trf.xlu0
        %v492 = vpop.trf.xlu0
        %v493 = vpop.trf.xlu0
        %v494 = vpop.trf.xlu0
        %v495 = vpop.trf.xlu0
        %v496 = vpop.trf.xlu0
        %v497 = vpop.trf.xlu0
        %v498 = vpop.trf.xlu0
        %v499 = vpop.trf.xlu0
        %v500 = vpop.trf.xlu0
        %501 = vxpose.xlu0.b32.start [1/16] %v213, 128
        %502 = vxpose.xlu0.b32.cont [2/16] %v215, 128
        %503 = vxpose.xlu0.b32.cont [3/16] %v217, 128
        %504 = vxpose.xlu0.b32.cont [4/16] %v219, 128
        %505 = vxpose.xlu0.b32.cont [5/16] %v221, 128
        %506 = vxpose.xlu0.b32.cont [6/16] %v223, 128
        %507 = vxpose.xlu0.b32.cont [7/16] %v225, 128
        %508 = vxpose.xlu0.b32.cont [8/16] %v227, 128
        %509 = vxpose.xlu0.b32.cont [9/16] %v229, 128
        %510 = vxpose.xlu0.b32.cont [10/16] %v231, 128
        %511 = vxpose.xlu0.b32.cont [11/16] %v233, 128
        %512 = vxpose.xlu0.b32.cont [12/16] %v235, 128
        %513 = vxpose.xlu0.b32.cont [13/16] %v237, 128
        %514 = vxpose.xlu0.b32.cont [14/16] %v239, 128
        %515 = vxpose.xlu0.b32.cont [15/16] %v241, 128
        %516 = vxpose.xlu0.b32.end [16/16] %v243, 128
        %v517 = vpop.trf.xlu0
        %v518 = vpop.trf.xlu0
        %v519 = vpop.trf.xlu0
        %v520 = vpop.trf.xlu0
        %v521 = vpop.trf.xlu0
        %v522 = vpop.trf.xlu0
        %v523 = vpop.trf.xlu0
        %v524 = vpop.trf.xlu0
        %v525 = vpop.trf.xlu0
        %v526 = vpop.trf.xlu0
        %v527 = vpop.trf.xlu0
        %v528 = vpop.trf.xlu0
        %v529 = vpop.trf.xlu0
        %v530 = vpop.trf.xlu0
        %v531 = vpop.trf.xlu0
        %v532 = vpop.trf.xlu0
        %533 = vxpose.xlu0.b32.start [1/16] %v214, 128
        %534 = vxpose.xlu0.b32.cont [2/16] %v216, 128
        %535 = vxpose.xlu0.b32.cont [3/16] %v218, 128
        %536 = vxpose.xlu0.b32.cont [4/16] %v220, 128
        %537 = vxpose.xlu0.b32.cont [5/16] %v222, 128
        %538 = vxpose.xlu0.b32.cont [6/16] %v224, 128
        %539 = vxpose.xlu0.b32.cont [7/16] %v226, 128
        %540 = vxpose.xlu0.b32.cont [8/16] %v228, 128
        %541 = vxpose.xlu0.b32.cont [9/16] %v230, 128
        %542 = vxpose.xlu0.b32.cont [10/16] %v232, 128
        %543 = vxpose.xlu0.b32.cont [11/16] %v234, 128
        %544 = vxpose.xlu0.b32.cont [12/16] %v236, 128
        %545 = vxpose.xlu0.b32.cont [13/16] %v238, 128
        %546 = vxpose.xlu0.b32.cont [14/16] %v240, 128
        %547 = vxpose.xlu0.b32.cont [15/16] %v242, 128
        %548 = vxpose.xlu0.b32.end [16/16] %v244, 128
        %v549 = vpop.trf.xlu0
        %v550 = vpop.trf.xlu0
        %v551 = vpop.trf.xlu0
        %v552 = vpop.trf.xlu0
        %v553 = vpop.trf.xlu0
        %v554 = vpop.trf.xlu0
        %v555 = vpop.trf.xlu0
        %v556 = vpop.trf.xlu0
        %v557 = vpop.trf.xlu0
        %v558 = vpop.trf.xlu0
        %v559 = vpop.trf.xlu0
        %v560 = vpop.trf.xlu0
        %v561 = vpop.trf.xlu0
        %v562 = vpop.trf.xlu0
        %v563 = vpop.trf.xlu0
        %v564 = vpop.trf.xlu0
        %565 = vxpose.xlu0.b32.start [1/16] %v245, 128
        %566 = vxpose.xlu0.b32.cont [2/16] %v247, 128
        %567 = vxpose.xlu0.b32.cont [3/16] %v249, 128
        %568 = vxpose.xlu0.b32.cont [4/16] %v251, 128
        %569 = vxpose.xlu0.b32.cont [5/16] %v253, 128
        %570 = vxpose.xlu0.b32.cont [6/16] %v255, 128
        %571 = vxpose.xlu0.b32.cont [7/16] %v257, 128
        %572 = vxpose.xlu0.b32.cont [8/16] %v259, 128
        %573 = vxpose.xlu0.b32.cont [9/16] %v261, 128
        %574 = vxpose.xlu0.b32.cont [10/16] %v263, 128
        %575 = vxpose.xlu0.b32.cont [11/16] %v265, 128
        %576 = vxpose.xlu0.b32.cont [12/16] %v267, 128
        %577 = vxpose.xlu0.b32.cont [13/16] %v269, 128
        %578 = vxpose.xlu0.b32.cont [14/16] %v271, 128
        %579 = vxpose.xlu0.b32.cont [15/16] %v273, 128
        %580 = vxpose.xlu0.b32.end [16/16] %v275, 128
        %v581 = vpop.trf.xlu0
        %v582 = vpop.trf.xlu0
        %v583 = vpop.trf.xlu0
        %v584 = vpop.trf.xlu0
        %v585 = vpop.trf.xlu0
        %v586 = vpop.trf.xlu0
        %v587 = vpop.trf.xlu0
        %v588 = vpop.trf.xlu0
        %v589 = vpop.trf.xlu0
        %v590 = vpop.trf.xlu0
        %v591 = vpop.trf.xlu0
        %v592 = vpop.trf.xlu0
        %v593 = vpop.trf.xlu0
        %v594 = vpop.trf.xlu0
        %v595 = vpop.trf.xlu0
        %v596 = vpop.trf.xlu0
        %597 = vxpose.xlu0.b32.start [1/16] %v246, 128
        %598 = vxpose.xlu0.b32.cont [2/16] %v248, 128
        %599 = vxpose.xlu0.b32.cont [3/16] %v250, 128
        %600 = vxpose.xlu0.b32.cont [4/16] %v252, 128
        %601 = vxpose.xlu0.b32.cont [5/16] %v254, 128
        %602 = vxpose.xlu0.b32.cont [6/16] %v256, 128
        %603 = vxpose.xlu0.b32.cont [7/16] %v258, 128
        %604 = vxpose.xlu0.b32.cont [8/16] %v260, 128
        %605 = vxpose.xlu0.b32.cont [9/16] %v262, 128
        %606 = vxpose.xlu0.b32.cont [10/16] %v264, 128
        %607 = vxpose.xlu0.b32.cont [11/16] %v266, 128
        %608 = vxpose.xlu0.b32.cont [12/16] %v268, 128
        %609 = vxpose.xlu0.b32.cont [13/16] %v270, 128
        %610 = vxpose.xlu0.b32.cont [14/16] %v272, 128
        %611 = vxpose.xlu0.b32.cont [15/16] %v274, 128
        %612 = vxpose.xlu0.b32.end [16/16] %v276, 128
        %v613 = vpop.trf.xlu0
        %v614 = vpop.trf.xlu0
        %v615 = vpop.trf.xlu0
        %v616 = vpop.trf.xlu0
        %v617 = vpop.trf.xlu0
        %v618 = vpop.trf.xlu0
        %v619 = vpop.trf.xlu0
        %v620 = vpop.trf.xlu0
        %v621 = vpop.trf.xlu0
        %v622 = vpop.trf.xlu0
        %v623 = vpop.trf.xlu0
        %v624 = vpop.trf.xlu0
        %v625 = vpop.trf.xlu0
        %v626 = vpop.trf.xlu0
        %v627 = vpop.trf.xlu0
        %v628 = vpop.trf.xlu0
        %629 = vxpose.xlu0.b32.start [1/16] %v277, 128
        %630 = vxpose.xlu0.b32.cont [2/16] %v279, 128
        %631 = vxpose.xlu0.b32.cont [3/16] %v281, 128
        %632 = vxpose.xlu0.b32.cont [4/16] %v283, 128
        %633 = vxpose.xlu0.b32.cont [5/16] %v285, 128
        %634 = vxpose.xlu0.b32.cont [6/16] %v287, 128
        %635 = vxpose.xlu0.b32.cont [7/16] %v289, 128
        %636 = vxpose.xlu0.b32.cont [8/16] %v291, 128
        %637 = vxpose.xlu0.b32.cont [9/16] %v293, 128
        %638 = vxpose.xlu0.b32.cont [10/16] %v295, 128
        %639 = vxpose.xlu0.b32.cont [11/16] %v297, 128
        %640 = vxpose.xlu0.b32.cont [12/16] %v299, 128
        %641 = vxpose.xlu0.b32.cont [13/16] %v301, 128
        %642 = vxpose.xlu0.b32.cont [14/16] %v303, 128
        %643 = vxpose.xlu0.b32.cont [15/16] %v305, 128
        %644 = vxpose.xlu0.b32.end [16/16] %v307, 128
        %v645 = vpop.trf.xlu0
        %v646 = vpop.trf.xlu0
        %v647 = vpop.trf.xlu0
        %v648 = vpop.trf.xlu0
        %v649 = vpop.trf.xlu0
        %v650 = vpop.trf.xlu0
        %v651 = vpop.trf.xlu0
        %v652 = vpop.trf.xlu0
        %v653 = vpop.trf.xlu0
        %v654 = vpop.trf.xlu0
        %v655 = vpop.trf.xlu0
        %v656 = vpop.trf.xlu0
        %v657 = vpop.trf.xlu0
        %v658 = vpop.trf.xlu0
        %v659 = vpop.trf.xlu0
        %v660 = vpop.trf.xlu0
        %661 = vxpose.xlu0.b32.start [1/16] %v278, 128
        %662 = vxpose.xlu0.b32.cont [2/16] %v280, 128
        %663 = vxpose.xlu0.b32.cont [3/16] %v282, 128
        %664 = vxpose.xlu0.b32.cont [4/16] %v284, 128
        %665 = vxpose.xlu0.b32.cont [5/16] %v286, 128
        %666 = vxpose.xlu0.b32.cont [6/16] %v288, 128
        %667 = vxpose.xlu0.b32.cont [7/16] %v290, 128
        %668 = vxpose.xlu0.b32.cont [8/16] %v292, 128
        %669 = vxpose.xlu0.b32.cont [9/16] %v294, 128
        %670 = vxpose.xlu0.b32.cont [10/16] %v296, 128
        %671 = vxpose.xlu0.b32.cont [11/16] %v298, 128
        %672 = vxpose.xlu0.b32.cont [12/16] %v300, 128
        %673 = vxpose.xlu0.b32.cont [13/16] %v302, 128
        %674 = vxpose.xlu0.b32.cont [14/16] %v304, 128
        %675 = vxpose.xlu0.b32.cont [15/16] %v306, 128
        %676 = vxpose.xlu0.b32.end [16/16] %v308, 128
        %v677 = vpop.trf.xlu0
        %v678 = vpop.trf.xlu0
        %v679 = vpop.trf.xlu0
        %v680 = vpop.trf.xlu0
        %v681 = vpop.trf.xlu0
        %v682 = vpop.trf.xlu0
        %v683 = vpop.trf.xlu0
        %v684 = vpop.trf.xlu0
        %v685 = vpop.trf.xlu0
        %v686 = vpop.trf.xlu0
        %v687 = vpop.trf.xlu0
        %v688 = vpop.trf.xlu0
        %v689 = vpop.trf.xlu0
        %v690 = vpop.trf.xlu0
        %v691 = vpop.trf.xlu0
        %v692 = vpop.trf.xlu0
        %693 = vmatpush.msra.mxu0 %v339
        %694 = vmatpush.msra.mxu0 %v337
        %695 = vmatpush.msra.mxu0 %v335
        %696 = vmatpush.msra.mxu0 %v333
        %697 = vmatpush.msra.mxu0 %v331
        %698 = vmatpush.msra.mxu0 %v329
        %699 = vmatpush.msra.mxu0 %v327
        %700 = vmatpush.msra.mxu0 %v325
        %701 = vmatpush.msra.mxu0 %v323
        %702 = vmatpush.msra.mxu0 %v321
        %703 = vmatpush.msra.mxu0 %v319
        %704 = vmatpush.msra.mxu0 %v317
        %705 = vmatpush.msra.mxu0 %v315
        %706 = vmatpush.msra.mxu0 %v313
        %707 = vmatpush.msra.mxu0 %v311
        %708 = vmatpush.msra.mxu0 %v309
        %709 = vmatmul.f32.gmra.mxu0 %v453
        %v710 = vpop.f32.mrf.mxu0
        %v711 = vadd.f32 0.0, %v710
        %712 = vmatmul.f32.gmra.mxu0 %v454
        %v713 = vpop.f32.mrf.mxu0
        %v714 = vadd.f32 0.0, %v713
        %715 = vmatmul.f32.gmra.mxu0 %v455
        %v716 = vpop.f32.mrf.mxu0
        %v717 = vadd.f32 0.0, %v716
        %718 = vmatmul.f32.gmra.mxu0 %v456
        %v719 = vpop.f32.mrf.mxu0
        %v720 = vadd.f32 0.0, %v719
        %721 = vmatmul.f32.gmra.mxu0 %v457
        %v722 = vpop.f32.mrf.mxu0
        %v723 = vadd.f32 0.0, %v722
        %724 = vmatmul.f32.gmra.mxu0 %v458
        %v725 = vpop.f32.mrf.mxu0
        %v726 = vadd.f32 0.0, %v725
        %727 = vmatmul.f32.gmra.mxu0 %v459
        %v728 = vpop.f32.mrf.mxu0
        %v729 = vadd.f32 0.0, %v728
        %730 = vmatmul.f32.gmra.mxu0 %v460
        %v731 = vpop.f32.mrf.mxu0
        %v732 = vadd.f32 0.0, %v731
        %733 = vmatmul.f32.gmra.mxu0 %v461
        %v734 = vpop.f32.mrf.mxu0
        %v735 = vadd.f32 0.0, %v734
        %736 = vmatmul.f32.gmra.mxu0 %v462
        %v737 = vpop.f32.mrf.mxu0
        %v738 = vadd.f32 0.0, %v737
        %739 = vmatmul.f32.gmra.mxu0 %v463
        %v740 = vpop.f32.mrf.mxu0
        %v741 = vadd.f32 0.0, %v740
        %742 = vmatmul.f32.gmra.mxu0 %v464
        %v743 = vpop.f32.mrf.mxu0
        %v744 = vadd.f32 0.0, %v743
        %745 = vmatmul.f32.gmra.mxu0 %v465
        %v746 = vpop.f32.mrf.mxu0
        %v747 = vadd.f32 0.0, %v746
        %748 = vmatmul.f32.gmra.mxu0 %v466
        %v749 = vpop.f32.mrf.mxu0
        %v750 = vadd.f32 0.0, %v749
        %751 = vmatmul.f32.gmra.mxu0 %v467
        %v752 = vpop.f32.mrf.mxu0
        %v753 = vadd.f32 0.0, %v752
        %754 = vmatmul.f32.gmra.mxu0 %v468
        %v755 = vpop.f32.mrf.mxu0
        %v756 = vadd.f32 0.0, %v755
        %757 = vmatmul.f32.gmra.mxu0 %v485
        %v758 = vpop.f32.mrf.mxu0
        %v759 = vadd.f32 0.0, %v758
        %760 = vmatmul.f32.gmra.mxu0 %v486
        %v761 = vpop.f32.mrf.mxu0
        %v762 = vadd.f32 0.0, %v761
        %763 = vmatmul.f32.gmra.mxu0 %v487
        %v764 = vpop.f32.mrf.mxu0
        %v765 = vadd.f32 0.0, %v764
        %766 = vmatmul.f32.gmra.mxu0 %v488
        %v767 = vpop.f32.mrf.mxu0
        %v768 = vadd.f32 0.0, %v767
        %769 = vmatmul.f32.gmra.mxu0 %v489
        %v770 = vpop.f32.mrf.mxu0
        %v771 = vadd.f32 0.0, %v770
        %772 = vmatmul.f32.gmra.mxu0 %v490
        %v773 = vpop.f32.mrf.mxu0
        %v774 = vadd.f32 0.0, %v773
        %775 = vmatmul.f32.gmra.mxu0 %v491
        %v776 = vpop.f32.mrf.mxu0
        %v777 = vadd.f32 0.0, %v776
        %778 = vmatmul.f32.gmra.mxu0 %v492
        %v779 = vpop.f32.mrf.mxu0
        %v780 = vadd.f32 0.0, %v779
        %781 = vmatmul.f32.gmra.mxu0 %v493
        %v782 = vpop.f32.mrf.mxu0
        %v783 = vadd.f32 0.0, %v782
        %784 = vmatmul.f32.gmra.mxu0 %v494
        %v785 = vpop.f32.mrf.mxu0
        %v786 = vadd.f32 0.0, %v785
        %787 = vmatmul.f32.gmra.mxu0 %v495
        %v788 = vpop.f32.mrf.mxu0
        %v789 = vadd.f32 0.0, %v788
        %790 = vmatmul.f32.gmra.mxu0 %v496
        %v791 = vpop.f32.mrf.mxu0
        %v792 = vadd.f32 0.0, %v791
        %793 = vmatmul.f32.gmra.mxu0 %v497
        %v794 = vpop.f32.mrf.mxu0
        %v795 = vadd.f32 0.0, %v794
        %796 = vmatmul.f32.gmra.mxu0 %v498
        %v797 = vpop.f32.mrf.mxu0
        %v798 = vadd.f32 0.0, %v797
        %799 = vmatmul.f32.gmra.mxu0 %v499
        %v800 = vpop.f32.mrf.mxu0
        %v801 = vadd.f32 0.0, %v800
        %802 = vmatmul.f32.gmra.mxu0 %v500
        %v803 = vpop.f32.mrf.mxu0
        %v804 = vadd.f32 0.0, %v803
        %805 = vdwg.mxu0
        %806 = vmatpush.msra.mxu0 %v371
        %807 = vmatpush.msra.mxu0 %v369
        %808 = vmatpush.msra.mxu0 %v367
        %809 = vmatpush.msra.mxu0 %v365
        %810 = vmatpush.msra.mxu0 %v363
        %811 = vmatpush.msra.mxu0 %v361
        %812 = vmatpush.msra.mxu0 %v359
        %813 = vmatpush.msra.mxu0 %v357
        %814 = vmatpush.msra.mxu0 %v355
        %815 = vmatpush.msra.mxu0 %v353
        %816 = vmatpush.msra.mxu0 %v351
        %817 = vmatpush.msra.mxu0 %v349
        %818 = vmatpush.msra.mxu0 %v347
        %819 = vmatpush.msra.mxu0 %v345
        %820 = vmatpush.msra.mxu0 %v343
        %821 = vmatpush.msra.mxu0 %v341
        %822 = vmatmul.f32.gmra.mxu0 %v517
        %v823 = vpop.f32.mrf.mxu0
        %v824 = vadd.f32 %v711, %v823
        %825 = vmatmul.f32.gmra.mxu0 %v518
        %v826 = vpop.f32.mrf.mxu0
        %v827 = vadd.f32 %v714, %v826
        %828 = vmatmul.f32.gmra.mxu0 %v519
        %v829 = vpop.f32.mrf.mxu0
        %v830 = vadd.f32 %v717, %v829
        %831 = vmatmul.f32.gmra.mxu0 %v520
        %v832 = vpop.f32.mrf.mxu0
        %v833 = vadd.f32 %v720, %v832
        %834 = vmatmul.f32.gmra.mxu0 %v521
        %v835 = vpop.f32.mrf.mxu0
        %v836 = vadd.f32 %v723, %v835
        %837 = vmatmul.f32.gmra.mxu0 %v522
        %v838 = vpop.f32.mrf.mxu0
        %v839 = vadd.f32 %v726, %v838
        %840 = vmatmul.f32.gmra.mxu0 %v523
        %v841 = vpop.f32.mrf.mxu0
        %v842 = vadd.f32 %v729, %v841
        %843 = vmatmul.f32.gmra.mxu0 %v524
        %v844 = vpop.f32.mrf.mxu0
        %v845 = vadd.f32 %v732, %v844
        %846 = vmatmul.f32.gmra.mxu0 %v525
        %v847 = vpop.f32.mrf.mxu0
        %v848 = vadd.f32 %v735, %v847
        %849 = vmatmul.f32.gmra.mxu0 %v526
        %v850 = vpop.f32.mrf.mxu0
        %v851 = vadd.f32 %v738, %v850
        %852 = vmatmul.f32.gmra.mxu0 %v527
        %v853 = vpop.f32.mrf.mxu0
        %v854 = vadd.f32 %v741, %v853
        %855 = vmatmul.f32.gmra.mxu0 %v528
        %v856 = vpop.f32.mrf.mxu0
        %v857 = vadd.f32 %v744, %v856
        %858 = vmatmul.f32.gmra.mxu0 %v529
        %v859 = vpop.f32.mrf.mxu0
        %v860 = vadd.f32 %v747, %v859
        %861 = vmatmul.f32.gmra.mxu0 %v530
        %v862 = vpop.f32.mrf.mxu0
        %v863 = vadd.f32 %v750, %v862
        %864 = vmatmul.f32.gmra.mxu0 %v531
        %v865 = vpop.f32.mrf.mxu0
        %v866 = vadd.f32 %v753, %v865
        %867 = vmatmul.f32.gmra.mxu0 %v532
        %v868 = vpop.f32.mrf.mxu0
        %v869 = vadd.f32 %v756, %v868
        %870 = vmatmul.f32.gmra.mxu0 %v549
        %v871 = vpop.f32.mrf.mxu0
        %v872 = vadd.f32 %v759, %v871
        %873 = vmatmul.f32.gmra.mxu0 %v550
        %v874 = vpop.f32.mrf.mxu0
        %v875 = vadd.f32 %v762, %v874
        %876 = vmatmul.f32.gmra.mxu0 %v551
        %v877 = vpop.f32.mrf.mxu0
        %v878 = vadd.f32 %v765, %v877
        %879 = vmatmul.f32.gmra.mxu0 %v552
        %v880 = vpop.f32.mrf.mxu0
        %v881 = vadd.f32 %v768, %v880
        %882 = vmatmul.f32.gmra.mxu0 %v553
        %v883 = vpop.f32.mrf.mxu0
        %v884 = vadd.f32 %v771, %v883
        %885 = vmatmul.f32.gmra.mxu0 %v554
        %v886 = vpop.f32.mrf.mxu0
        %v887 = vadd.f32 %v774, %v886
        %888 = vmatmul.f32.gmra.mxu0 %v555
        %v889 = vpop.f32.mrf.mxu0
        %v890 = vadd.f32 %v777, %v889
        %891 = vmatmul.f32.gmra.mxu0 %v556
        %v892 = vpop.f32.mrf.mxu0
        %v893 = vadd.f32 %v780, %v892
        %894 = vmatmul.f32.gmra.mxu0 %v557
        %v895 = vpop.f32.mrf.mxu0
        %v896 = vadd.f32 %v783, %v895
        %897 = vmatmul.f32.gmra.mxu0 %v558
        %v898 = vpop.f32.mrf.mxu0
        %v899 = vadd.f32 %v786, %v898
        %900 = vmatmul.f32.gmra.mxu0 %v559
        %v901 = vpop.f32.mrf.mxu0
        %v902 = vadd.f32 %v789, %v901
        %903 = vmatmul.f32.gmra.mxu0 %v560
        %v904 = vpop.f32.mrf.mxu0
        %v905 = vadd.f32 %v792, %v904
        %906 = vmatmul.f32.gmra.mxu0 %v561
        %v907 = vpop.f32.mrf.mxu0
        %v908 = vadd.f32 %v795, %v907
        %909 = vmatmul.f32.gmra.mxu0 %v562
        %v910 = vpop.f32.mrf.mxu0
        %v911 = vadd.f32 %v798, %v910
        %912 = vmatmul.f32.gmra.mxu0 %v563
        %v913 = vpop.f32.mrf.mxu0
        %v914 = vadd.f32 %v801, %v913
        %915 = vmatmul.f32.gmra.mxu0 %v564
        %v916 = vpop.f32.mrf.mxu0
        %v917 = vadd.f32 %v804, %v916
        %918 = vdwg.mxu0
        %919 = vmatpush.msra.mxu0 %v403
        %920 = vmatpush.msra.mxu0 %v401
        %921 = vmatpush.msra.mxu0 %v399
        %922 = vmatpush.msra.mxu0 %v397
        %923 = vmatpush.msra.mxu0 %v395
        %924 = vmatpush.msra.mxu0 %v393
        %925 = vmatpush.msra.mxu0 %v391
        %926 = vmatpush.msra.mxu0 %v389
        %927 = vmatpush.msra.mxu0 %v387
        %928 = vmatpush.msra.mxu0 %v385
        %929 = vmatpush.msra.mxu0 %v383
        %930 = vmatpush.msra.mxu0 %v381
        %931 = vmatpush.msra.mxu0 %v379
        %932 = vmatpush.msra.mxu0 %v377
        %933 = vmatpush.msra.mxu0 %v375
        %934 = vmatpush.msra.mxu0 %v373
        %935 = vmatmul.f32.gmra.mxu0 %v581
        %v936 = vpop.f32.mrf.mxu0
        %v937 = vadd.f32 %v824, %v936
        %938 = vmatmul.f32.gmra.mxu0 %v582
        %v939 = vpop.f32.mrf.mxu0
        %v940 = vadd.f32 %v827, %v939
        %941 = vmatmul.f32.gmra.mxu0 %v583
        %v942 = vpop.f32.mrf.mxu0
        %v943 = vadd.f32 %v830, %v942
        %944 = vmatmul.f32.gmra.mxu0 %v584
        %v945 = vpop.f32.mrf.mxu0
        %v946 = vadd.f32 %v833, %v945
        %947 = vmatmul.f32.gmra.mxu0 %v585
        %v948 = vpop.f32.mrf.mxu0
        %v949 = vadd.f32 %v836, %v948
        %950 = vmatmul.f32.gmra.mxu0 %v586
        %v951 = vpop.f32.mrf.mxu0
        %v952 = vadd.f32 %v839, %v951
        %953 = vmatmul.f32.gmra.mxu0 %v587
        %v954 = vpop.f32.mrf.mxu0
        %v955 = vadd.f32 %v842, %v954
        %956 = vmatmul.f32.gmra.mxu0 %v588
        %v957 = vpop.f32.mrf.mxu0
        %v958 = vadd.f32 %v845, %v957
        %959 = vmatmul.f32.gmra.mxu0 %v589
        %v960 = vpop.f32.mrf.mxu0
        %v961 = vadd.f32 %v848, %v960
        %962 = vmatmul.f32.gmra.mxu0 %v590
        %v963 = vpop.f32.mrf.mxu0
        %v964 = vadd.f32 %v851, %v963
        %965 = vmatmul.f32.gmra.mxu0 %v591
        %v966 = vpop.f32.mrf.mxu0
        %v967 = vadd.f32 %v854, %v966
        %968 = vmatmul.f32.gmra.mxu0 %v592
        %v969 = vpop.f32.mrf.mxu0
        %v970 = vadd.f32 %v857, %v969
        %971 = vmatmul.f32.gmra.mxu0 %v593
        %v972 = vpop.f32.mrf.mxu0
        %v973 = vadd.f32 %v860, %v972
        %974 = vmatmul.f32.gmra.mxu0 %v594
        %v975 = vpop.f32.mrf.mxu0
        %v976 = vadd.f32 %v863, %v975
        %977 = vmatmul.f32.gmra.mxu0 %v595
        %v978 = vpop.f32.mrf.mxu0
        %v979 = vadd.f32 %v866, %v978
        %980 = vmatmul.f32.gmra.mxu0 %v596
        %v981 = vpop.f32.mrf.mxu0
        %v982 = vadd.f32 %v869, %v981
        %983 = vmatmul.f32.gmra.mxu0 %v613
        %v984 = vpop.f32.mrf.mxu0
        %v985 = vadd.f32 %v872, %v984
        %986 = vmatmul.f32.gmra.mxu0 %v614
        %v987 = vpop.f32.mrf.mxu0
        %v988 = vadd.f32 %v875, %v987
        %989 = vmatmul.f32.gmra.mxu0 %v615
        %v990 = vpop.f32.mrf.mxu0
        %v991 = vadd.f32 %v878, %v990
        %992 = vmatmul.f32.gmra.mxu0 %v616
        %v993 = vpop.f32.mrf.mxu0
        %v994 = vadd.f32 %v881, %v993
        %995 = vmatmul.f32.gmra.mxu0 %v617
        %v996 = vpop.f32.mrf.mxu0
        %v997 = vadd.f32 %v884, %v996
        %998 = vmatmul.f32.gmra.mxu0 %v618
        %v999 = vpop.f32.mrf.mxu0
        %v1000 = vadd.f32 %v887, %v999
        %1001 = vmatmul.f32.gmra.mxu0 %v619
        %v1002 = vpop.f32.mrf.mxu0
        %v1003 = vadd.f32 %v890, %v1002
        %1004 = vmatmul.f32.gmra.mxu0 %v620
        %v1005 = vpop.f32.mrf.mxu0
        %v1006 = vadd.f32 %v893, %v1005
        %1007 = vmatmul.f32.gmra.mxu0 %v621
        %v1008 = vpop.f32.mrf.mxu0
        %v1009 = vadd.f32 %v896, %v1008
        %1010 = vmatmul.f32.gmra.mxu0 %v622
        %v1011 = vpop.f32.mrf.mxu0
        %v1012 = vadd.f32 %v899, %v1011
        %1013 = vmatmul.f32.gmra.mxu0 %v623
        %v1014 = vpop.f32.mrf.mxu0
        %v1015 = vadd.f32 %v902, %v1014
        %1016 = vmatmul.f32.gmra.mxu0 %v624
        %v1017 = vpop.f32.mrf.mxu0
        %v1018 = vadd.f32 %v905, %v1017
        %1019 = vmatmul.f32.gmra.mxu0 %v625
        %v1020 = vpop.f32.mrf.mxu0
        %v1021 = vadd.f32 %v908, %v1020
        %1022 = vmatmul.f32.gmra.mxu0 %v626
        %v1023 = vpop.f32.mrf.mxu0
        %v1024 = vadd.f32 %v911, %v1023
        %1025 = vmatmul.f32.gmra.mxu0 %v627
        %v1026 = vpop.f32.mrf.mxu0
        %v1027 = vadd.f32 %v914, %v1026
        %1028 = vmatmul.f32.gmra.mxu0 %v628
        %v1029 = vpop.f32.mrf.mxu0
        %v1030 = vadd.f32 %v917, %v1029
        %1031 = vdwg.mxu0
        %1032 = vmatpush.msra.mxu0 %v435
        %1033 = vmatpush.msra.mxu0 %v433
        %1034 = vmatpush.msra.mxu0 %v431
        %1035 = vmatpush.msra.mxu0 %v429
        %1036 = vmatpush.msra.mxu0 %v427
        %1037 = vmatpush.msra.mxu0 %v425
        %1038 = vmatpush.msra.mxu0 %v423
        %1039 = vmatpush.msra.mxu0 %v421
        %1040 = vmatpush.msra.mxu0 %v419
        %1041 = vmatpush.msra.mxu0 %v417
        %1042 = vmatpush.msra.mxu0 %v415
        %1043 = vmatpush.msra.mxu0 %v413
        %1044 = vmatpush.msra.mxu0 %v411
        %1045 = vmatpush.msra.mxu0 %v409
        %1046 = vmatpush.msra.mxu0 %v407
        %1047 = vmatpush.msra.mxu0 %v405
        %1048 = vmatmul.f32.gmra.mxu0 %v645
        %v1049 = vpop.f32.mrf.mxu0
        %v1050 = vadd.f32 %v937, %v1049
        %1051 = vmatmul.f32.gmra.mxu0 %v646
        %v1052 = vpop.f32.mrf.mxu0
        %v1053 = vadd.f32 %v940, %v1052
        %1054 = vmatmul.f32.gmra.mxu0 %v647
        %v1055 = vpop.f32.mrf.mxu0
        %v1056 = vadd.f32 %v943, %v1055
        %1057 = vmatmul.f32.gmra.mxu0 %v648
        %v1058 = vpop.f32.mrf.mxu0
        %v1059 = vadd.f32 %v946, %v1058
        %1060 = vmatmul.f32.gmra.mxu0 %v649
        %v1061 = vpop.f32.mrf.mxu0
        %v1062 = vadd.f32 %v949, %v1061
        %1063 = vmatmul.f32.gmra.mxu0 %v650
        %v1064 = vpop.f32.mrf.mxu0
        %v1065 = vadd.f32 %v952, %v1064
        %1066 = vmatmul.f32.gmra.mxu0 %v651
        %v1067 = vpop.f32.mrf.mxu0
        %v1068 = vadd.f32 %v955, %v1067
        %1069 = vmatmul.f32.gmra.mxu0 %v652
        %v1070 = vpop.f32.mrf.mxu0
        %v1071 = vadd.f32 %v958, %v1070
        %1072 = vmatmul.f32.gmra.mxu0 %v653
        %v1073 = vpop.f32.mrf.mxu0
        %v1074 = vadd.f32 %v961, %v1073
        %1075 = vmatmul.f32.gmra.mxu0 %v654
        %v1076 = vpop.f32.mrf.mxu0
        %v1077 = vadd.f32 %v964, %v1076
        %1078 = vmatmul.f32.gmra.mxu0 %v655
        %v1079 = vpop.f32.mrf.mxu0
        %v1080 = vadd.f32 %v967, %v1079
        %1081 = vmatmul.f32.gmra.mxu0 %v656
        %v1082 = vpop.f32.mrf.mxu0
        %v1083 = vadd.f32 %v970, %v1082
        %1084 = vmatmul.f32.gmra.mxu0 %v657
        %v1085 = vpop.f32.mrf.mxu0
        %v1086 = vadd.f32 %v973, %v1085
        %1087 = vmatmul.f32.gmra.mxu0 %v658
        %v1088 = vpop.f32.mrf.mxu0
        %v1089 = vadd.f32 %v976, %v1088
        %1090 = vmatmul.f32.gmra.mxu0 %v659
        %v1091 = vpop.f32.mrf.mxu0
        %v1092 = vadd.f32 %v979, %v1091
        %1093 = vmatmul.f32.gmra.mxu0 %v660
        %v1094 = vpop.f32.mrf.mxu0
        %v1095 = vadd.f32 %v982, %v1094
        %1096 = vmatmul.f32.gmra.mxu0 %v677
        %v1097 = vpop.f32.mrf.mxu0
        %v1098 = vadd.f32 %v985, %v1097
        %1099 = vmatmul.f32.gmra.mxu0 %v678
        %v1100 = vpop.f32.mrf.mxu0
        %v1101 = vadd.f32 %v988, %v1100
        %1102 = vmatmul.f32.gmra.mxu0 %v679
        %v1103 = vpop.f32.mrf.mxu0
        %v1104 = vadd.f32 %v991, %v1103
        %1105 = vmatmul.f32.gmra.mxu0 %v680
        %v1106 = vpop.f32.mrf.mxu0
        %v1107 = vadd.f32 %v994, %v1106
        %1108 = vmatmul.f32.gmra.mxu0 %v681
        %v1109 = vpop.f32.mrf.mxu0
        %v1110 = vadd.f32 %v997, %v1109
        %1111 = vmatmul.f32.gmra.mxu0 %v682
        %v1112 = vpop.f32.mrf.mxu0
        %v1113 = vadd.f32 %v1000, %v1112
        %1114 = vmatmul.f32.gmra.mxu0 %v683
        %v1115 = vpop.f32.mrf.mxu0
        %v1116 = vadd.f32 %v1003, %v1115
        %1117 = vmatmul.f32.gmra.mxu0 %v684
        %v1118 = vpop.f32.mrf.mxu0
        %v1119 = vadd.f32 %v1006, %v1118
        %1120 = vmatmul.f32.gmra.mxu0 %v685
        %v1121 = vpop.f32.mrf.mxu0
        %v1122 = vadd.f32 %v1009, %v1121
        %1123 = vmatmul.f32.gmra.mxu0 %v686
        %v1124 = vpop.f32.mrf.mxu0
        %v1125 = vadd.f32 %v1012, %v1124
        %1126 = vmatmul.f32.gmra.mxu0 %v687
        %v1127 = vpop.f32.mrf.mxu0
        %v1128 = vadd.f32 %v1015, %v1127
        %1129 = vmatmul.f32.gmra.mxu0 %v688
        %v1130 = vpop.f32.mrf.mxu0
        %v1131 = vadd.f32 %v1018, %v1130
        %1132 = vmatmul.f32.gmra.mxu0 %v689
        %v1133 = vpop.f32.mrf.mxu0
        %v1134 = vadd.f32 %v1021, %v1133
        %1135 = vmatmul.f32.gmra.mxu0 %v690
        %v1136 = vpop.f32.mrf.mxu0
        %v1137 = vadd.f32 %v1024, %v1136
        %1138 = vmatmul.f32.gmra.mxu0 %v691
        %v1139 = vpop.f32.mrf.mxu0
        %v1140 = vadd.f32 %v1027, %v1139
        %1141 = vmatmul.f32.gmra.mxu0 %v692
        %v1142 = vpop.f32.mrf.mxu0
        %v1143 = vadd.f32 %v1030, %v1142
        %1144 = vdwg.mxu0
        %1145 = vmatpush.msra.mxu0 %v340
        %1146 = vmatpush.msra.mxu0 %v338
        %1147 = vmatpush.msra.mxu0 %v336
        %1148 = vmatpush.msra.mxu0 %v334
        %1149 = vmatpush.msra.mxu0 %v332
        %1150 = vmatpush.msra.mxu0 %v330
        %1151 = vmatpush.msra.mxu0 %v328
        %1152 = vmatpush.msra.mxu0 %v326
        %1153 = vmatpush.msra.mxu0 %v324
        %1154 = vmatpush.msra.mxu0 %v322
        %1155 = vmatpush.msra.mxu0 %v320
        %1156 = vmatpush.msra.mxu0 %v318
        %1157 = vmatpush.msra.mxu0 %v316
        %1158 = vmatpush.msra.mxu0 %v314
        %1159 = vmatpush.msra.mxu0 %v312
        %1160 = vmatpush.msra.mxu0 %v310
        %1161 = vmatmul.f32.gmra.mxu0 %v453
        %v1162 = vpop.f32.mrf.mxu0
        %v1163 = vadd.f32 0.0, %v1162
        %1164 = vmatmul.f32.gmra.mxu0 %v454
        %v1165 = vpop.f32.mrf.mxu0
        %v1166 = vadd.f32 0.0, %v1165
        %1167 = vmatmul.f32.gmra.mxu0 %v455
        %v1168 = vpop.f32.mrf.mxu0
        %v1169 = vadd.f32 0.0, %v1168
        %1170 = vmatmul.f32.gmra.mxu0 %v456
        %v1171 = vpop.f32.mrf.mxu0
        %v1172 = vadd.f32 0.0, %v1171
        %1173 = vmatmul.f32.gmra.mxu0 %v457
        %v1174 = vpop.f32.mrf.mxu0
        %v1175 = vadd.f32 0.0, %v1174
        %1176 = vmatmul.f32.gmra.mxu0 %v458
        %v1177 = vpop.f32.mrf.mxu0
        %v1178 = vadd.f32 0.0, %v1177
        %1179 = vmatmul.f32.gmra.mxu0 %v459
        %v1180 = vpop.f32.mrf.mxu0
        %v1181 = vadd.f32 0.0, %v1180
        %1182 = vmatmul.f32.gmra.mxu0 %v460
        %v1183 = vpop.f32.mrf.mxu0
        %v1184 = vadd.f32 0.0, %v1183
        %1185 = vmatmul.f32.gmra.mxu0 %v461
        %v1186 = vpop.f32.mrf.mxu0
        %v1187 = vadd.f32 0.0, %v1186
        %1188 = vmatmul.f32.gmra.mxu0 %v462
        %v1189 = vpop.f32.mrf.mxu0
        %v1190 = vadd.f32 0.0, %v1189
        %1191 = vmatmul.f32.gmra.mxu0 %v463
        %v1192 = vpop.f32.mrf.mxu0
        %v1193 = vadd.f32 0.0, %v1192
        %1194 = vmatmul.f32.gmra.mxu0 %v464
        %v1195 = vpop.f32.mrf.mxu0
        %v1196 = vadd.f32 0.0, %v1195
        %1197 = vmatmul.f32.gmra.mxu0 %v465
        %v1198 = vpop.f32.mrf.mxu0
        %v1199 = vadd.f32 0.0, %v1198
        %1200 = vmatmul.f32.gmra.mxu0 %v466
        %v1201 = vpop.f32.mrf.mxu0
        %v1202 = vadd.f32 0.0, %v1201
        %1203 = vmatmul.f32.gmra.mxu0 %v467
        %v1204 = vpop.f32.mrf.mxu0
        %v1205 = vadd.f32 0.0, %v1204
        %1206 = vmatmul.f32.gmra.mxu0 %v468
        %v1207 = vpop.f32.mrf.mxu0
        %v1208 = vadd.f32 0.0, %v1207
        %1209 = vmatmul.f32.gmra.mxu0 %v485
        %v1210 = vpop.f32.mrf.mxu0
        %v1211 = vadd.f32 0.0, %v1210
        %1212 = vmatmul.f32.gmra.mxu0 %v486
        %v1213 = vpop.f32.mrf.mxu0
        %v1214 = vadd.f32 0.0, %v1213
        %1215 = vmatmul.f32.gmra.mxu0 %v487
        %v1216 = vpop.f32.mrf.mxu0
        %v1217 = vadd.f32 0.0, %v1216
        %1218 = vmatmul.f32.gmra.mxu0 %v488
        %v1219 = vpop.f32.mrf.mxu0
        %v1220 = vadd.f32 0.0, %v1219
        %1221 = vmatmul.f32.gmra.mxu0 %v489
        %v1222 = vpop.f32.mrf.mxu0
        %v1223 = vadd.f32 0.0, %v1222
        %1224 = vmatmul.f32.gmra.mxu0 %v490
        %v1225 = vpop.f32.mrf.mxu0
        %v1226 = vadd.f32 0.0, %v1225
        %1227 = vmatmul.f32.gmra.mxu0 %v491
        %v1228 = vpop.f32.mrf.mxu0
        %v1229 = vadd.f32 0.0, %v1228
        %1230 = vmatmul.f32.gmra.mxu0 %v492
        %v1231 = vpop.f32.mrf.mxu0
        %v1232 = vadd.f32 0.0, %v1231
        %1233 = vmatmul.f32.gmra.mxu0 %v493
        %v1234 = vpop.f32.mrf.mxu0
        %v1235 = vadd.f32 0.0, %v1234
        %1236 = vmatmul.f32.gmra.mxu0 %v494
        %v1237 = vpop.f32.mrf.mxu0
        %v1238 = vadd.f32 0.0, %v1237
        %1239 = vmatmul.f32.gmra.mxu0 %v495
        %v1240 = vpop.f32.mrf.mxu0
        %v1241 = vadd.f32 0.0, %v1240
        %1242 = vmatmul.f32.gmra.mxu0 %v496
        %v1243 = vpop.f32.mrf.mxu0
        %v1244 = vadd.f32 0.0, %v1243
        %1245 = vmatmul.f32.gmra.mxu0 %v497
        %v1246 = vpop.f32.mrf.mxu0
        %v1247 = vadd.f32 0.0, %v1246
        %1248 = vmatmul.f32.gmra.mxu0 %v498
        %v1249 = vpop.f32.mrf.mxu0
        %v1250 = vadd.f32 0.0, %v1249
        %1251 = vmatmul.f32.gmra.mxu0 %v499
        %v1252 = vpop.f32.mrf.mxu0
        %v1253 = vadd.f32 0.0, %v1252
        %1254 = vmatmul.f32.gmra.mxu0 %v500
        %v1255 = vpop.f32.mrf.mxu0
        %v1256 = vadd.f32 0.0, %v1255
        %1257 = vdwg.mxu0
        %1258 = vmatpush.msra.mxu0 %v372
        %1259 = vmatpush.msra.mxu0 %v370
        %1260 = vmatpush.msra.mxu0 %v368
        %1261 = vmatpush.msra.mxu0 %v366
        %1262 = vmatpush.msra.mxu0 %v364
        %1263 = vmatpush.msra.mxu0 %v362
        %1264 = vmatpush.msra.mxu0 %v360
        %1265 = vmatpush.msra.mxu0 %v358
        %1266 = vmatpush.msra.mxu0 %v356
        %1267 = vmatpush.msra.mxu0 %v354
        %1268 = vmatpush.msra.mxu0 %v352
        %1269 = vmatpush.msra.mxu0 %v350
        %1270 = vmatpush.msra.mxu0 %v348
        %1271 = vmatpush.msra.mxu0 %v346
        %1272 = vmatpush.msra.mxu0 %v344
        %1273 = vmatpush.msra.mxu0 %v342
        %1274 = vmatmul.f32.gmra.mxu0 %v517
        %v1275 = vpop.f32.mrf.mxu0
        %v1276 = vadd.f32 %v1163, %v1275
        %1277 = vmatmul.f32.gmra.mxu0 %v518
        %v1278 = vpop.f32.mrf.mxu0
        %v1279 = vadd.f32 %v1166, %v1278
        %1280 = vmatmul.f32.gmra.mxu0 %v519
        %v1281 = vpop.f32.mrf.mxu0
        %v1282 = vadd.f32 %v1169, %v1281
        %1283 = vmatmul.f32.gmra.mxu0 %v520
        %v1284 = vpop.f32.mrf.mxu0
        %v1285 = vadd.f32 %v1172, %v1284
        %1286 = vmatmul.f32.gmra.mxu0 %v521
        %v1287 = vpop.f32.mrf.mxu0
        %v1288 = vadd.f32 %v1175, %v1287
        %1289 = vmatmul.f32.gmra.mxu0 %v522
        %v1290 = vpop.f32.mrf.mxu0
        %v1291 = vadd.f32 %v1178, %v1290
        %1292 = vmatmul.f32.gmra.mxu0 %v523
        %v1293 = vpop.f32.mrf.mxu0
        %v1294 = vadd.f32 %v1181, %v1293
        %1295 = vmatmul.f32.gmra.mxu0 %v524
        %v1296 = vpop.f32.mrf.mxu0
        %v1297 = vadd.f32 %v1184, %v1296
        %1298 = vmatmul.f32.gmra.mxu0 %v525
        %v1299 = vpop.f32.mrf.mxu0
        %v1300 = vadd.f32 %v1187, %v1299
        %1301 = vmatmul.f32.gmra.mxu0 %v526
        %v1302 = vpop.f32.mrf.mxu0
        %v1303 = vadd.f32 %v1190, %v1302
        %1304 = vmatmul.f32.gmra.mxu0 %v527
        %v1305 = vpop.f32.mrf.mxu0
        %v1306 = vadd.f32 %v1193, %v1305
        %1307 = vmatmul.f32.gmra.mxu0 %v528
        %v1308 = vpop.f32.mrf.mxu0
        %v1309 = vadd.f32 %v1196, %v1308
        %1310 = vmatmul.f32.gmra.mxu0 %v529
        %v1311 = vpop.f32.mrf.mxu0
        %v1312 = vadd.f32 %v1199, %v1311
        %1313 = vmatmul.f32.gmra.mxu0 %v530
        %v1314 = vpop.f32.mrf.mxu0
        %v1315 = vadd.f32 %v1202, %v1314
        %1316 = vmatmul.f32.gmra.mxu0 %v531
        %v1317 = vpop.f32.mrf.mxu0
        %v1318 = vadd.f32 %v1205, %v1317
        %1319 = vmatmul.f32.gmra.mxu0 %v532
        %v1320 = vpop.f32.mrf.mxu0
        %v1321 = vadd.f32 %v1208, %v1320
        %1322 = vmatmul.f32.gmra.mxu0 %v549
        %v1323 = vpop.f32.mrf.mxu0
        %v1324 = vadd.f32 %v1211, %v1323
        %1325 = vmatmul.f32.gmra.mxu0 %v550
        %v1326 = vpop.f32.mrf.mxu0
        %v1327 = vadd.f32 %v1214, %v1326
        %1328 = vmatmul.f32.gmra.mxu0 %v551
        %v1329 = vpop.f32.mrf.mxu0
        %v1330 = vadd.f32 %v1217, %v1329
        %1331 = vmatmul.f32.gmra.mxu0 %v552
        %v1332 = vpop.f32.mrf.mxu0
        %v1333 = vadd.f32 %v1220, %v1332
        %1334 = vmatmul.f32.gmra.mxu0 %v553
        %v1335 = vpop.f32.mrf.mxu0
        %v1336 = vadd.f32 %v1223, %v1335
        %1337 = vmatmul.f32.gmra.mxu0 %v554
        %v1338 = vpop.f32.mrf.mxu0
        %v1339 = vadd.f32 %v1226, %v1338
        %1340 = vmatmul.f32.gmra.mxu0 %v555
        %v1341 = vpop.f32.mrf.mxu0
        %v1342 = vadd.f32 %v1229, %v1341
        %1343 = vmatmul.f32.gmra.mxu0 %v556
        %v1344 = vpop.f32.mrf.mxu0
        %v1345 = vadd.f32 %v1232, %v1344
        %1346 = vmatmul.f32.gmra.mxu0 %v557
        %v1347 = vpop.f32.mrf.mxu0
        %v1348 = vadd.f32 %v1235, %v1347
        %1349 = vmatmul.f32.gmra.mxu0 %v558
        %v1350 = vpop.f32.mrf.mxu0
        %v1351 = vadd.f32 %v1238, %v1350
        %1352 = vmatmul.f32.gmra.mxu0 %v559
        %v1353 = vpop.f32.mrf.mxu0
        %v1354 = vadd.f32 %v1241, %v1353
        %1355 = vmatmul.f32.gmra.mxu0 %v560
        %v1356 = vpop.f32.mrf.mxu0
        %v1357 = vadd.f32 %v1244, %v1356
        %1358 = vmatmul.f32.gmra.mxu0 %v561
        %v1359 = vpop.f32.mrf.mxu0
        %v1360 = vadd.f32 %v1247, %v1359
        %1361 = vmatmul.f32.gmra.mxu0 %v562
        %v1362 = vpop.f32.mrf.mxu0
        %v1363 = vadd.f32 %v1250, %v1362
        %1364 = vmatmul.f32.gmra.mxu0 %v563
        %v1365 = vpop.f32.mrf.mxu0
        %v1366 = vadd.f32 %v1253, %v1365
        %1367 = vmatmul.f32.gmra.mxu0 %v564
        %v1368 = vpop.f32.mrf.mxu0
        %v1369 = vadd.f32 %v1256, %v1368
        %1370 = vdwg.mxu0
        %1371 = vmatpush.msra.mxu0 %v404
        %1372 = vmatpush.msra.mxu0 %v402
        %1373 = vmatpush.msra.mxu0 %v400
        %1374 = vmatpush.msra.mxu0 %v398
        %1375 = vmatpush.msra.mxu0 %v396
        %1376 = vmatpush.msra.mxu0 %v394
        %1377 = vmatpush.msra.mxu0 %v392
        %1378 = vmatpush.msra.mxu0 %v390
        %1379 = vmatpush.msra.mxu0 %v388
        %1380 = vmatpush.msra.mxu0 %v386
        %1381 = vmatpush.msra.mxu0 %v384
        %1382 = vmatpush.msra.mxu0 %v382
        %1383 = vmatpush.msra.mxu0 %v380
        %1384 = vmatpush.msra.mxu0 %v378
        %1385 = vmatpush.msra.mxu0 %v376
        %1386 = vmatpush.msra.mxu0 %v374
        %1387 = vmatmul.f32.gmra.mxu0 %v581
        %v1388 = vpop.f32.mrf.mxu0
        %v1389 = vadd.f32 %v1276, %v1388
        %1390 = vmatmul.f32.gmra.mxu0 %v582
        %v1391 = vpop.f32.mrf.mxu0
        %v1392 = vadd.f32 %v1279, %v1391
        %1393 = vmatmul.f32.gmra.mxu0 %v583
        %v1394 = vpop.f32.mrf.mxu0
        %v1395 = vadd.f32 %v1282, %v1394
        %1396 = vmatmul.f32.gmra.mxu0 %v584
        %v1397 = vpop.f32.mrf.mxu0
        %v1398 = vadd.f32 %v1285, %v1397
        %1399 = vmatmul.f32.gmra.mxu0 %v585
        %v1400 = vpop.f32.mrf.mxu0
        %v1401 = vadd.f32 %v1288, %v1400
        %1402 = vmatmul.f32.gmra.mxu0 %v586
        %v1403 = vpop.f32.mrf.mxu0
        %v1404 = vadd.f32 %v1291, %v1403
        %1405 = vmatmul.f32.gmra.mxu0 %v587
        %v1406 = vpop.f32.mrf.mxu0
        %v1407 = vadd.f32 %v1294, %v1406
        %1408 = vmatmul.f32.gmra.mxu0 %v588
        %v1409 = vpop.f32.mrf.mxu0
        %v1410 = vadd.f32 %v1297, %v1409
        %1411 = vmatmul.f32.gmra.mxu0 %v589
        %v1412 = vpop.f32.mrf.mxu0
        %v1413 = vadd.f32 %v1300, %v1412
        %1414 = vmatmul.f32.gmra.mxu0 %v590
        %v1415 = vpop.f32.mrf.mxu0
        %v1416 = vadd.f32 %v1303, %v1415
        %1417 = vmatmul.f32.gmra.mxu0 %v591
        %v1418 = vpop.f32.mrf.mxu0
        %v1419 = vadd.f32 %v1306, %v1418
        %1420 = vmatmul.f32.gmra.mxu0 %v592
        %v1421 = vpop.f32.mrf.mxu0
        %v1422 = vadd.f32 %v1309, %v1421
        %1423 = vmatmul.f32.gmra.mxu0 %v593
        %v1424 = vpop.f32.mrf.mxu0
        %v1425 = vadd.f32 %v1312, %v1424
        %1426 = vmatmul.f32.gmra.mxu0 %v594
        %v1427 = vpop.f32.mrf.mxu0
        %v1428 = vadd.f32 %v1315, %v1427
        %1429 = vmatmul.f32.gmra.mxu0 %v595
        %v1430 = vpop.f32.mrf.mxu0
        %v1431 = vadd.f32 %v1318, %v1430
        %1432 = vmatmul.f32.gmra.mxu0 %v596
        %v1433 = vpop.f32.mrf.mxu0
        %v1434 = vadd.f32 %v1321, %v1433
        %1435 = vmatmul.f32.gmra.mxu0 %v613
        %v1436 = vpop.f32.mrf.mxu0
        %v1437 = vadd.f32 %v1324, %v1436
        %1438 = vmatmul.f32.gmra.mxu0 %v614
        %v1439 = vpop.f32.mrf.mxu0
        %v1440 = vadd.f32 %v1327, %v1439
        %1441 = vmatmul.f32.gmra.mxu0 %v615
        %v1442 = vpop.f32.mrf.mxu0
        %v1443 = vadd.f32 %v1330, %v1442
        %1444 = vmatmul.f32.gmra.mxu0 %v616
        %v1445 = vpop.f32.mrf.mxu0
        %v1446 = vadd.f32 %v1333, %v1445
        %1447 = vmatmul.f32.gmra.mxu0 %v617
        %v1448 = vpop.f32.mrf.mxu0
        %v1449 = vadd.f32 %v1336, %v1448
        %1450 = vmatmul.f32.gmra.mxu0 %v618
        %v1451 = vpop.f32.mrf.mxu0
        %v1452 = vadd.f32 %v1339, %v1451
        %1453 = vmatmul.f32.gmra.mxu0 %v619
        %v1454 = vpop.f32.mrf.mxu0
        %v1455 = vadd.f32 %v1342, %v1454
        %1456 = vmatmul.f32.gmra.mxu0 %v620
        %v1457 = vpop.f32.mrf.mxu0
        %v1458 = vadd.f32 %v1345, %v1457
        %1459 = vmatmul.f32.gmra.mxu0 %v621
        %v1460 = vpop.f32.mrf.mxu0
        %v1461 = vadd.f32 %v1348, %v1460
        %1462 = vmatmul.f32.gmra.mxu0 %v622
        %v1463 = vpop.f32.mrf.mxu0
        %v1464 = vadd.f32 %v1351, %v1463
        %1465 = vmatmul.f32.gmra.mxu0 %v623
        %v1466 = vpop.f32.mrf.mxu0
        %v1467 = vadd.f32 %v1354, %v1466
        %1468 = vmatmul.f32.gmra.mxu0 %v624
        %v1469 = vpop.f32.mrf.mxu0
        %v1470 = vadd.f32 %v1357, %v1469
        %1471 = vmatmul.f32.gmra.mxu0 %v625
        %v1472 = vpop.f32.mrf.mxu0
        %v1473 = vadd.f32 %v1360, %v1472
        %1474 = vmatmul.f32.gmra.mxu0 %v626
        %v1475 = vpop.f32.mrf.mxu0
        %v1476 = vadd.f32 %v1363, %v1475
        %1477 = vmatmul.f32.gmra.mxu0 %v627
        %v1478 = vpop.f32.mrf.mxu0
        %v1479 = vadd.f32 %v1366, %v1478
        %1480 = vmatmul.f32.gmra.mxu0 %v628
        %v1481 = vpop.f32.mrf.mxu0
        %v1482 = vadd.f32 %v1369, %v1481
        %1483 = vdwg.mxu0
        %1484 = vmatpush.msra.mxu0 %v436
        %1485 = vmatpush.msra.mxu0 %v434
        %1486 = vmatpush.msra.mxu0 %v432
        %1487 = vmatpush.msra.mxu0 %v430
        %1488 = vmatpush.msra.mxu0 %v428
        %1489 = vmatpush.msra.mxu0 %v426
        %1490 = vmatpush.msra.mxu0 %v424
        %1491 = vmatpush.msra.mxu0 %v422
        %1492 = vmatpush.msra.mxu0 %v420
        %1493 = vmatpush.msra.mxu0 %v418
        %1494 = vmatpush.msra.mxu0 %v416
        %1495 = vmatpush.msra.mxu0 %v414
        %1496 = vmatpush.msra.mxu0 %v412
        %1497 = vmatpush.msra.mxu0 %v410
        %1498 = vmatpush.msra.mxu0 %v408
        %1499 = vmatpush.msra.mxu0 %v406
        %1500 = vmatmul.f32.gmra.mxu0 %v645
        %v1501 = vpop.f32.mrf.mxu0
        %v1502 = vadd.f32 %v1389, %v1501
        %1503 = vmatmul.f32.gmra.mxu0 %v646
        %v1504 = vpop.f32.mrf.mxu0
        %v1505 = vadd.f32 %v1392, %v1504
        %1506 = vmatmul.f32.gmra.mxu0 %v647
        %v1507 = vpop.f32.mrf.mxu0
        %v1508 = vadd.f32 %v1395, %v1507
        %1509 = vmatmul.f32.gmra.mxu0 %v648
        %v1510 = vpop.f32.mrf.mxu0
        %v1511 = vadd.f32 %v1398, %v1510
        %1512 = vmatmul.f32.gmra.mxu0 %v649
        %v1513 = vpop.f32.mrf.mxu0
        %v1514 = vadd.f32 %v1401, %v1513
        %1515 = vmatmul.f32.gmra.mxu0 %v650
        %v1516 = vpop.f32.mrf.mxu0
        %v1517 = vadd.f32 %v1404, %v1516
        %1518 = vmatmul.f32.gmra.mxu0 %v651
        %v1519 = vpop.f32.mrf.mxu0
        %v1520 = vadd.f32 %v1407, %v1519
        %1521 = vmatmul.f32.gmra.mxu0 %v652
        %v1522 = vpop.f32.mrf.mxu0
        %v1523 = vadd.f32 %v1410, %v1522
        %1524 = vmatmul.f32.gmra.mxu0 %v653
        %v1525 = vpop.f32.mrf.mxu0
        %v1526 = vadd.f32 %v1413, %v1525
        %1527 = vmatmul.f32.gmra.mxu0 %v654
        %v1528 = vpop.f32.mrf.mxu0
        %v1529 = vadd.f32 %v1416, %v1528
        %1530 = vmatmul.f32.gmra.mxu0 %v655
        %v1531 = vpop.f32.mrf.mxu0
        %v1532 = vadd.f32 %v1419, %v1531
        %1533 = vmatmul.f32.gmra.mxu0 %v656
        %v1534 = vpop.f32.mrf.mxu0
        %v1535 = vadd.f32 %v1422, %v1534
        %1536 = vmatmul.f32.gmra.mxu0 %v657
        %v1537 = vpop.f32.mrf.mxu0
        %v1538 = vadd.f32 %v1425, %v1537
        %1539 = vmatmul.f32.gmra.mxu0 %v658
        %v1540 = vpop.f32.mrf.mxu0
        %v1541 = vadd.f32 %v1428, %v1540
        %1542 = vmatmul.f32.gmra.mxu0 %v659
        %v1543 = vpop.f32.mrf.mxu0
        %v1544 = vadd.f32 %v1431, %v1543
        %1545 = vmatmul.f32.gmra.mxu0 %v660
        %v1546 = vpop.f32.mrf.mxu0
        %v1547 = vadd.f32 %v1434, %v1546
        %1548 = vmatmul.f32.gmra.mxu0 %v677
        %v1549 = vpop.f32.mrf.mxu0
        %v1550 = vadd.f32 %v1437, %v1549
        %1551 = vmatmul.f32.gmra.mxu0 %v678
        %v1552 = vpop.f32.mrf.mxu0
        %v1553 = vadd.f32 %v1440, %v1552
        %1554 = vmatmul.f32.gmra.mxu0 %v679
        %v1555 = vpop.f32.mrf.mxu0
        %v1556 = vadd.f32 %v1443, %v1555
        %1557 = vmatmul.f32.gmra.mxu0 %v680
        %v1558 = vpop.f32.mrf.mxu0
        %v1559 = vadd.f32 %v1446, %v1558
        %1560 = vmatmul.f32.gmra.mxu0 %v681
        %v1561 = vpop.f32.mrf.mxu0
        %v1562 = vadd.f32 %v1449, %v1561
        %1563 = vmatmul.f32.gmra.mxu0 %v682
        %v1564 = vpop.f32.mrf.mxu0
        %v1565 = vadd.f32 %v1452, %v1564
        %1566 = vmatmul.f32.gmra.mxu0 %v683
        %v1567 = vpop.f32.mrf.mxu0
        %v1568 = vadd.f32 %v1455, %v1567
        %1569 = vmatmul.f32.gmra.mxu0 %v684
        %v1570 = vpop.f32.mrf.mxu0
        %v1571 = vadd.f32 %v1458, %v1570
        %1572 = vmatmul.f32.gmra.mxu0 %v685
        %v1573 = vpop.f32.mrf.mxu0
        %v1574 = vadd.f32 %v1461, %v1573
        %1575 = vmatmul.f32.gmra.mxu0 %v686
        %v1576 = vpop.f32.mrf.mxu0
        %v1577 = vadd.f32 %v1464, %v1576
        %1578 = vmatmul.f32.gmra.mxu0 %v687
        %v1579 = vpop.f32.mrf.mxu0
        %v1580 = vadd.f32 %v1467, %v1579
        %1581 = vmatmul.f32.gmra.mxu0 %v688
        %v1582 = vpop.f32.mrf.mxu0
        %v1583 = vadd.f32 %v1470, %v1582
        %1584 = vmatmul.f32.gmra.mxu0 %v689
        %v1585 = vpop.f32.mrf.mxu0
        %v1586 = vadd.f32 %v1473, %v1585
        %1587 = vmatmul.f32.gmra.mxu0 %v690
        %v1588 = vpop.f32.mrf.mxu0
        %v1589 = vadd.f32 %v1476, %v1588
        %1590 = vmatmul.f32.gmra.mxu0 %v691
        %v1591 = vpop.f32.mrf.mxu0
        %v1592 = vadd.f32 %v1479, %v1591
        %1593 = vmatmul.f32.gmra.mxu0 %v692
        %v1594 = vpop.f32.mrf.mxu0
        %v1595 = vadd.f32 %v1482, %v1594
        %1596 = vdwg.mxu0
        %v1597 = vmul.f32 %v1050, %v1050
        %v1598 = vmul.f32 %v1502, %v1502
        %v1599 = vmul.f32 %v1053, %v1053
        %v1600 = vmul.f32 %v1505, %v1505
        %v1601 = vmul.f32 %v1056, %v1056
        %v1602 = vmul.f32 %v1508, %v1508
        %v1603 = vmul.f32 %v1059, %v1059
        %v1604 = vmul.f32 %v1511, %v1511
        %v1605 = vmul.f32 %v1062, %v1062
        %v1606 = vmul.f32 %v1514, %v1514
        %v1607 = vmul.f32 %v1065, %v1065
        %v1608 = vmul.f32 %v1517, %v1517
        %v1609 = vmul.f32 %v1068, %v1068
        %v1610 = vmul.f32 %v1520, %v1520
        %v1611 = vmul.f32 %v1071, %v1071
        %v1612 = vmul.f32 %v1523, %v1523
        %v1613 = vmul.f32 %v1074, %v1074
        %v1614 = vmul.f32 %v1526, %v1526
        %v1615 = vmul.f32 %v1077, %v1077
        %v1616 = vmul.f32 %v1529, %v1529
        %v1617 = vmul.f32 %v1080, %v1080
        %v1618 = vmul.f32 %v1532, %v1532
        %v1619 = vmul.f32 %v1083, %v1083
        %v1620 = vmul.f32 %v1535, %v1535
        %v1621 = vmul.f32 %v1086, %v1086
        %v1622 = vmul.f32 %v1538, %v1538
        %v1623 = vmul.f32 %v1089, %v1089
        %v1624 = vmul.f32 %v1541, %v1541
        %v1625 = vmul.f32 %v1092, %v1092
        %v1626 = vmul.f32 %v1544, %v1544
        %v1627 = vmul.f32 %v1095, %v1095
        %v1628 = vmul.f32 %v1547, %v1547
        %v1629 = vmul.f32 %v1098, %v1098
        %v1630 = vmul.f32 %v1550, %v1550
        %v1631 = vmul.f32 %v1101, %v1101
        %v1632 = vmul.f32 %v1553, %v1553
        %v1633 = vmul.f32 %v1104, %v1104
        %v1634 = vmul.f32 %v1556, %v1556
        %v1635 = vmul.f32 %v1107, %v1107
        %v1636 = vmul.f32 %v1559, %v1559
        %v1637 = vmul.f32 %v1110, %v1110
        %v1638 = vmul.f32 %v1562, %v1562
        %v1639 = vmul.f32 %v1113, %v1113
        %v1640 = vmul.f32 %v1565, %v1565
        %v1641 = vmul.f32 %v1116, %v1116
        %v1642 = vmul.f32 %v1568, %v1568
        %v1643 = vmul.f32 %v1119, %v1119
        %v1644 = vmul.f32 %v1571, %v1571
        %v1645 = vmul.f32 %v1122, %v1122
        %v1646 = vmul.f32 %v1574, %v1574
        %v1647 = vmul.f32 %v1125, %v1125
        %v1648 = vmul.f32 %v1577, %v1577
        %v1649 = vmul.f32 %v1128, %v1128
        %v1650 = vmul.f32 %v1580, %v1580
        %v1651 = vmul.f32 %v1131, %v1131
        %v1652 = vmul.f32 %v1583, %v1583
        %v1653 = vmul.f32 %v1134, %v1134
        %v1654 = vmul.f32 %v1586, %v1586
        %v1655 = vmul.f32 %v1137, %v1137
        %v1656 = vmul.f32 %v1589, %v1589
        %v1657 = vmul.f32 %v1140, %v1140
        %v1658 = vmul.f32 %v1592, %v1592
        %v1659 = vmul.f32 %v1143, %v1143
        %v1660 = vmul.f32 %v1595, %v1595
        %v1661 = vadd.f32 %v1597, %v1598
        %v1662 = vadd.f32 %v1661, %v1599
        %v1663 = vadd.f32 %v1662, %v1600
        %v1664 = vadd.f32 %v1663, %v1601
        %v1665 = vadd.f32 %v1664, %v1602
        %v1666 = vadd.f32 %v1665, %v1603
        %v1667 = vadd.f32 %v1666, %v1604
        %v1668 = vadd.f32 %v1667, %v1605
        %v1669 = vadd.f32 %v1668, %v1606
        %v1670 = vadd.f32 %v1669, %v1607
        %v1671 = vadd.f32 %v1670, %v1608
        %v1672 = vadd.f32 %v1671, %v1609
        %v1673 = vadd.f32 %v1672, %v1610
        %v1674 = vadd.f32 %v1673, %v1611
        %v1675 = vadd.f32 %v1674, %v1612
        %v1676 = vadd.f32 %v1675, %v1613
        %v1677 = vadd.f32 %v1676, %v1614
        %v1678 = vadd.f32 %v1677, %v1615
        %v1679 = vadd.f32 %v1678, %v1616
        %v1680 = vadd.f32 %v1679, %v1617
        %v1681 = vadd.f32 %v1680, %v1618
        %v1682 = vadd.f32 %v1681, %v1619
        %v1683 = vadd.f32 %v1682, %v1620
        %v1684 = vadd.f32 %v1683, %v1621
        %v1685 = vadd.f32 %v1684, %v1622
        %v1686 = vadd.f32 %v1685, %v1623
        %v1687 = vadd.f32 %v1686, %v1624
        %v1688 = vadd.f32 %v1687, %v1625
        %v1689 = vadd.f32 %v1688, %v1626
        %v1690 = vadd.f32 %v1689, %v1627
        %v1691 = vadd.f32 %v1690, %v1628
        %v1692 = vadd.f32 %v1691, %v1629
        %v1693 = vadd.f32 %v1692, %v1630
        %v1694 = vadd.f32 %v1693, %v1631
        %v1695 = vadd.f32 %v1694, %v1632
        %v1696 = vadd.f32 %v1695, %v1633
        %v1697 = vadd.f32 %v1696, %v1634
        %v1698 = vadd.f32 %v1697, %v1635
        %v1699 = vadd.f32 %v1698, %v1636
        %v1700 = vadd.f32 %v1699, %v1637
        %v1701 = vadd.f32 %v1700, %v1638
        %v1702 = vadd.f32 %v1701, %v1639
        %v1703 = vadd.f32 %v1702, %v1640
        %v1704 = vadd.f32 %v1703, %v1641
        %v1705 = vadd.f32 %v1704, %v1642
        %v1706 = vadd.f32 %v1705, %v1643
        %v1707 = vadd.f32 %v1706, %v1644
        %v1708 = vadd.f32 %v1707, %v1645
        %v1709 = vadd.f32 %v1708, %v1646
        %v1710 = vadd.f32 %v1709, %v1647
        %v1711 = vadd.f32 %v1710, %v1648
        %v1712 = vadd.f32 %v1711, %v1649
        %v1713 = vadd.f32 %v1712, %v1650
        %v1714 = vadd.f32 %v1713, %v1651
        %v1715 = vadd.f32 %v1714, %v1652
        %v1716 = vadd.f32 %v1715, %v1653
        %v1717 = vadd.f32 %v1716, %v1654
        %v1718 = vadd.f32 %v1717, %v1655
        %v1719 = vadd.f32 %v1718, %v1656
        %v1720 = vadd.f32 %v1719, %v1657
        %v1721 = vadd.f32 %v1720, %v1658
        %v1722 = vadd.f32 %v1721, %v1659
        %v1723 = vadd.f32 %v1722, %v1660
        %1724 = vadd.xlane.f32.xlu0 %v1723
        %v1725 = vpop.xlane.xlu0 %1724
        %v1726 = vrot.slane %v1725, 4
        %v1727 = vadd.f32 %v1725, %v1726
        %v1728 = vrot.slane %v1727, 2
        %v1729 = vadd.f32 %v1727, %v1728
        %v1730 = vrot.slane %v1729, 1
        %v1731 = vadd.f32 %v1729, %v1730
        %s1732 = vtos %v1731
        %v1733 = vstv %s1732
        %v1734 = vrsqrt.pop %v1733
        %v1735 = vmul.f32 %v1734, %v1733
        %v1736 = vmul.f32 %v1735, %v1734
        %v1737 = vmul.f32 0.5, %v1736
        %v1738 = vsub.f32 1.5, %v1737
        %v1739 = vmul.f32 %v1734, %v1738
        %v1740 = vmul.f32 %v1733, %v1739
        %vm1741 = vcmp.eq.f32.partialorder %v1733, inf
        %v1742 = vsel %vm1741, %v1733, %v1740
        %vm1743 = vcmp.eq.f32.partialorder %v1733, 0.0
        %v1744 = vand.u32 %v1733, 2147483648
        %v1745 = vsel %vm1743, %v1744, %v1742
        %s1746 = vtos %v1745
        %v1747 = vstv %s1746
        %1748 = vst [vmem:[%s180] sm:$0xff] %v1747
        %s1749 = sand.u32 %s75, 1
        %s1750 = scalar_lea.sflag [#allocation4], %s1749
        %s1751 = sand.u32 %s75, 1
        %s1752 = smul.addr %s1751, 8
        %s1753 = scalar_lea.vmem [#allocation7], %s1752
        // Predicated region
        $region37: #{tpu_custom_call.1} parent=27 // pred_check
          %p1754 = pneg %p85
        $region38: #{tpu_custom_call.1} parent=27 // pred_check_branch
          %1756 = sbr.rel (%p1754) target = $region40
        $region39: #{tpu_custom_call.1} parent=27 // pred_region
          %1758 = vsyncadd %s1750, 0
          %s1759 = smul.addr %s20, 8
          %s1760 = scalar_lea.hbm %s2, %s1759
          %s1762 = sshll.u32 %s1753, 4
          %s1763 = int_to_ptr.vmem [resolvable:$true] %s1762
          %s1764 = sshll.u32 %s1760, 4
          %s1765 = int_to_ptr.hbm [resolvable:$true] %s1764
          %1767 = dma.vmem_to_hbm [thread:$0]  %s1763, 128, %s1765, %s1750
        $region40: #{tpu_custom_call.1} parent=27 // pred_fallthru
          _
      $region28: #{tpu_custom_call.1} parent=5 // pred_fallthru
        _
      %p1768 = scmp.le.s32.totalorder 2, %s15
      // Predicated region
      $region41: #{tpu_custom_call.1} parent=5 // pred_check
        %p1769 = pneg %p1768
      $region42: #{tpu_custom_call.1} parent=5 // pred_check_branch
        %1771 = sbr.rel (%p1769) target = $region44
      $region43: #{tpu_custom_call.1} parent=5 // pred_region
        %s1772 = ssub.s32 %s15, 2
        // Predicated region
        $region45: #{tpu_custom_call.1} parent=43 // pred_check
          %p1773 = pneg %p91
        $region46: #{tpu_custom_call.1} parent=43 // pred_check_branch
          %1775 = sbr.rel (%p1773) target = $region48
        $region47: #{tpu_custom_call.1} parent=43 // pred_region
          %s1776 = sand.u32 %s76, 1
          %s1777 = scalar_lea.sflag [#allocation4], %s1776
          %s1778 = sand.u32 %s76, 1
          %s1779 = smul.addr %s1778, 8
          %s1780 = scalar_lea.vmem [#allocation7], %s1779
          %1782 = dma.done %s1777, 128
        $region48: #{tpu_custom_call.1} parent=43 // pred_fallthru
          _
      $region44: #{tpu_custom_call.1} parent=5 // pred_fallthru
        _
    $region6: #{tpu_custom_call.1} parent=1 // loop_footer
      %s19 = sadd.s32 1, %s15
    $region7: #{tpu_custom_call.1} parent=1 // loop_footer_branch
      %14 = sbr.rel target = $region3
    $region8: #{tpu_custom_call.1} parent=1 // loop_exit
      _
    %1783 = vsyncpa [#allocation3], 1
    %s1784 = scalar_lea.sflag [#allocation3], 1
    %1785 = vsyncpa %s1784, 1
    %1786 = vsyncpa [#allocation6], 1
    %1787 = vsyncpa [#allocation4], 1
    %s1788 = scalar_lea.sflag [#allocation4], 1
    %1789 = vsyncpa %s1788, 1

</llo_original>
